<compile_context>
chip_gen: v7x
topology: tpu7x:2x2x1
jax: 0.10.0
libtpu: 0.0.40
codegen_flags: <defaults>
</compile_context>

<pallas_src>
import jax
import jax.numpy as jnp
from jax.experimental import pallas as pl
from jax.experimental.pallas import tpu as pltpu

block_size = 8
n_embd = 72
num_heads = 4
head_size = n_embd // num_heads  # 18; concat of heads equals n_embd for the proj


def mha_kernel(x_ref, wqkv_ref, wproj_ref, bproj_ref, o_ref):
    # x_ref: (B*T, C)  wqkv_ref: (C, 3*H*hs)  wproj_ref: (H, hs, C)  bproj_ref: (1, C)
    T = block_size
    H = num_heads
    hs = head_size
    BT, C = x_ref.shape
    B = BT // T

    x = x_ref[...].astype(jnp.float32)
    scale = jnp.float32(1.0) / jnp.sqrt(jnp.float32(C))  # torch scales by C**-0.5, C = n_embd

    # Single fused QKV projection for all batches & heads (one wide MXU matmul).
    qkv = jnp.dot(x, wqkv_ref[...], preferred_element_type=jnp.float32)  # (B*T, 3*H*hs)

    # Causal (tril) mask, built once.
    row = jax.lax.broadcasted_iota(jnp.int32, (T, T), 0)
    col = jax.lax.broadcasted_iota(jnp.int32, (T, T), 1)
    causal = row >= col
    neg = jnp.float32(-1e30)  # large finite; the diagonal is always unmasked so exp() is safe

    bias = bproj_ref[...].astype(jnp.float32)  # (1, C), hoisted out of the loops

    for b in range(B):  # static unrolled loop over batch (B is tiny)
        r0, r1 = b * T, (b + 1) * T
        acc = jnp.zeros((T, C), jnp.float32)
        for h in range(H):  # static unrolled loop over heads
            q = qkv[r0:r1, h * hs:(h + 1) * hs]
            k = qkv[r0:r1, H * hs + h * hs:H * hs + (h + 1) * hs]
            v = qkv[r0:r1, 2 * H * hs + h * hs:2 * H * hs + (h + 1) * hs]

            # q @ k^T without materializing a transpose (contract the hs dims).
            wei = jax.lax.dot_general(
                q, k, dimension_numbers=(((1,), (1,)), ((), ())),
                preferred_element_type=jnp.float32) * scale  # (T, T)
            wei = jnp.where(causal, wei, neg)
            wei = wei - jnp.max(wei, axis=-1, keepdims=True)
            p = jnp.exp(wei)
            denom = jnp.sum(p, axis=-1, keepdims=True)
            r = pl.reciprocal(denom, approx=True)   # EUP slot, ~free
            r = r * (2.0 - denom * r)               # one Newton step -> full f32 accuracy
            p = p * r
            # TODO(synk): attention dropout (p=0.1) omitted — identity in eval mode.

            head_out = jnp.dot(p, v, preferred_element_type=jnp.float32)  # (T, hs)
            # concat + proj folded: accumulate head_out @ Wproj_h (static head index).
            acc = acc + jnp.dot(head_out, wproj_ref[h],
                                preferred_element_type=jnp.float32)  # (T, C)

        # TODO(synk): output dropout (p=0.1) omitted — identity in eval mode.
        o_ref[r0:r1, :] = (acc + bias).astype(o_ref.dtype)


@jax.jit
def multi_head_attention(x, wq, wk, wv, wproj, bproj):
    B, T, C = x.shape
    H, hs = num_heads, head_size

    # Layout prep in plain JAX (outside the kernel):
    #  - fuse per-head Q/K/V weights into one (C, 3*H*hs) matrix,
    #  - stack the projection weight per head as (H, hs, C),
    #  - flatten batch into the matmul M dimension.
    wq_f = jnp.transpose(wq, (1, 0, 2)).reshape(C, H * hs)
    wk_f = jnp.transpose(wk, (1, 0, 2)).reshape(C, H * hs)
    wv_f = jnp.transpose(wv, (1, 0, 2)).reshape(C, H * hs)
    w_qkv = jnp.concatenate([wq_f, wk_f, wv_f], axis=1)  # (C, 3*H*hs)
    wproj_h = wproj.reshape(H, hs, C)                    # (H, hs, C)
    x2d = x.reshape(B * T, C)

    out2d = pl.pallas_call(
        mha_kernel,
        out_shape=jax.ShapeDtypeStruct((B * T, C), x.dtype),
        grid=(1,),  # single invocation; everything fits comfortably in VMEM
        in_specs=[
            pl.BlockSpec((B * T, C), lambda i: (0, 0)),
            pl.BlockSpec((C, 3 * H * hs), lambda i: (0, 0)),
            pl.BlockSpec((H, hs, C), lambda i: (0, 0, 0)),
            pl.BlockSpec((1, C), lambda i: (0, 0)),
        ],
        out_specs=pl.BlockSpec((B * T, C), lambda i: (0, 0)),
        compiler_params=pltpu.CompilerParams(
            dimension_semantics=("arbitrary",)),
    )(x2d, w_qkv, wproj_h, bproj)
    return out2d.reshape(B, T, C)


def reference(x, wq, wk, wv, wproj, bproj):
    """Pure-JAX reference of the PyTorch forward (eval mode)."""
    B, T, C = x.shape
    causal = jnp.tril(jnp.ones((T, T), dtype=bool))
    outs = []
    for h in range(num_heads):
        q = x @ wq[h]
        k = x @ wk[h]
        v = x @ wv[h]
        wei = (q @ jnp.swapaxes(k, -1, -2)) * (C ** -0.5)
        wei = jnp.where(causal, wei, -jnp.inf)
        wei = jax.nn.softmax(wei, axis=-1)
        outs.append(wei @ v)
    cat = jnp.concatenate(outs, axis=-1)
    return cat @ wproj + bproj[0]


if __name__ == "__main__":
    key = jax.random.PRNGKey(0)
    B, T, C = 2, block_size, n_embd

    k_x, k_q, k_k, k_v, k_pw, k_pb = jax.random.split(key, 6)
    x = jax.random.normal(k_x, (B, T, C), dtype=jnp.float32)

    # Deterministic param init (PyTorch Linear-style uniform +-1/sqrt(fan_in)).
    lim = 1.0 / (C ** 0.5)
    wq = jax.random.uniform(k_q, (num_heads, C, head_size), minval=-lim, maxval=lim, dtype=jnp.float32)
    wk = jax.random.uniform(k_k, (num_heads, C, head_size), minval=-lim, maxval=lim, dtype=jnp.float32)
    wv = jax.random.uniform(k_v, (num_heads, C, head_size), minval=-lim, maxval=lim, dtype=jnp.float32)
    # proj weight stored as (in, out) == torch_weight.T so the kernel does plain x @ W
    wproj = jax.random.uniform(k_pw, (C, C), minval=-lim, maxval=lim, dtype=jnp.float32)
    bproj = jax.random.uniform(k_pb, (1, C), minval=-lim, maxval=lim, dtype=jnp.float32)

    out = multi_head_attention(x, wq, wk, wv, wproj, bproj)
    out = jax.block_until_ready(out)

    ref = reference(x, wq, wk, wv, wproj, bproj)
    assert out.shape == (B, T, C)
    assert jnp.allclose(out, ref, atol=2e-3, rtol=2e-3), "mismatch vs reference"

    print("KERNEL_OK")
</pallas_src>

<mosaic_0001>
module attributes {stable_mosaic.version = 11 : i64} {
  func.func @mha_kernel(%arg0: i32, %arg1: memref<16x72xf32, #tpu.memory_space<vmem>>, %arg2: memref<72x216xf32, #tpu.memory_space<vmem>>, %arg3: memref<4x18x72xf32, #tpu.memory_space<vmem>>, %arg4: memref<1x72xf32, #tpu.memory_space<vmem>>, %arg5: memref<16x72xf32, #tpu.memory_space<vmem>>) attributes {dimension_semantics = [#tpu.dimension_semantics<arbitrary>], iteration_bounds = array<i64: 1>, scalar_prefetch = 0 : i64, scratch_operands = 0 : i64, tpu.core_type = #tpu.core_type<tc>, window_params = [{pipeline_mode = #tpu.pipeline_mode<synchronous>, transform_indices = @transform_0, window_bounds = array<i64: 16, 72>}, {pipeline_mode = #tpu.pipeline_mode<synchronous>, transform_indices = @transform_1, window_bounds = array<i64: 72, 216>}, {pipeline_mode = #tpu.pipeline_mode<synchronous>, transform_indices = @transform_2, window_bounds = array<i64: 4, 18, 72>}, {pipeline_mode = #tpu.pipeline_mode<synchronous>, transform_indices = @transform_3, window_bounds = array<i64: 1, 72>}, {pipeline_mode = #tpu.pipeline_mode<synchronous>, transform_indices = @transform_4, window_bounds = array<i64: 16, 72>}]} {
    %c0 = arith.constant 0 : index
    %c0_0 = arith.constant 0 : index
    %0 = vector.load %arg1[%c0, %c0_0] : memref<16x72xf32, #tpu.memory_space<vmem>>, vector<16x72xf32>
    %cst = arith.constant 7.200000e+01 : f32
    %1 = math.sqrt %cst : f32
    %cst_1 = arith.constant 1.000000e+00 : f32
    %2 = arith.divf %cst_1, %1 : f32
    %c0_2 = arith.constant 0 : index
    %c0_3 = arith.constant 0 : index
    %3 = vector.load %arg2[%c0_2, %c0_3] : memref<72x216xf32, #tpu.memory_space<vmem>>, vector<72x216xf32>
    %cst_4 = arith.constant dense<0.000000e+00> : vector<16x216xf32>
    %4 = tpu.matmul %0, %3, %cst_4 {dimension_numbers = #tpu.dot_dimension_numbers<[1], [0], [0], [1], [0, 0, 1, 1], [], []>} : vector<16x72xf32>, vector<72x216xf32>, vector<16x216xf32> -> vector<16x216xf32>
    %5 = tpu.iota {dimensions = array<i32: 0>} : vector<8x8xi32>
    %6 = tpu.iota {dimensions = array<i32: 1>} : vector<8x8xi32>
    %7 = arith.cmpi sge, %5, %6 : vector<8x8xi32>
    %c0_5 = arith.constant 0 : index
    %c0_6 = arith.constant 0 : index
    %8 = vector.load %arg4[%c0_5, %c0_6] : memref<1x72xf32, #tpu.memory_space<vmem>>, vector<1x72xf32>
    %cst_7 = arith.constant 0.000000e+00 : f32
    %9 = vector.broadcast %cst_7 : f32 to vector<8x72xf32>
    %10 = vector.extract_strided_slice %4 {offsets = [0, 0], sizes = [8, 18], strides = [1, 1]} : vector<16x216xf32> to vector<8x18xf32>
    %11 = vector.extract_strided_slice %4 {offsets = [0, 72], sizes = [8, 18], strides = [1, 1]} : vector<16x216xf32> to vector<8x18xf32>
    %12 = vector.extract_strided_slice %4 {offsets = [0, 144], sizes = [8, 18], strides = [1, 1]} : vector<16x216xf32> to vector<8x18xf32>
    %cst_8 = arith.constant dense<0.000000e+00> : vector<8x8xf32>
    %13 = tpu.matmul %10, %11, %cst_8 {dimension_numbers = #tpu.dot_dimension_numbers<[1], [1], [0], [0], [0, 0, 1, 0], [], []>} : vector<8x18xf32>, vector<8x18xf32>, vector<8x8xf32> -> vector<8x8xf32>
    %14 = vector.broadcast %2 : f32 to vector<8x8xf32>
    %15 = arith.mulf %13, %14 : vector<8x8xf32>
    %cst_9 = arith.constant -1.000000e+30 : f32
    %16 = vector.broadcast %cst_9 : f32 to vector<8x8xf32>
    %17 = arith.select %7, %15, %16 : vector<8x8xi1>, vector<8x8xf32>
    %cst_10 = arith.constant dense<0xFF800000> : vector<8xf32>
    %18 = vector.multi_reduction <maximumf>, %17, %cst_10 [1] : vector<8x8xf32> to vector<8xf32>
    %19 = vector.shape_cast %18 : vector<8xf32> to vector<8x1xf32>
    %20 = vector.broadcast %19 : vector<8x1xf32> to vector<8x8xf32>
    %21 = arith.subf %17, %20 : vector<8x8xf32>
    %22 = math.exp %21 : vector<8x8xf32>
    %cst_11 = arith.constant dense<0.000000e+00> : vector<8xf32>
    %23 = vector.multi_reduction <add>, %22, %cst_11 [1] : vector<8x8xf32> to vector<8xf32>
    %24 = vector.shape_cast %23 : vector<8xf32> to vector<8x1xf32>
    %25 = tpu.reciprocal %24 {approx = true} : vector<8x1xf32> -> vector<8x1xf32>
    %26 = arith.mulf %24, %25 : vector<8x1xf32>
    %cst_12 = arith.constant 2.000000e+00 : f32
    %27 = vector.broadcast %cst_12 : f32 to vector<8x1xf32>
    %28 = arith.subf %27, %26 : vector<8x1xf32>
    %29 = arith.mulf %25, %28 : vector<8x1xf32>
    %30 = vector.broadcast %29 : vector<8x1xf32> to vector<8x8xf32>
    %31 = arith.mulf %22, %30 : vector<8x8xf32>
    %cst_13 = arith.constant dense<0.000000e+00> : vector<8x18xf32>
    %32 = tpu.matmul %31, %12, %cst_13 {dimension_numbers = #tpu.dot_dimension_numbers<[1], [0], [0], [1], [0, 0, 1, 1], [], []>} : vector<8x8xf32>, vector<8x18xf32>, vector<8x18xf32> -> vector<8x18xf32>
    %c0_14 = arith.constant 0 : index
    %c0_15 = arith.constant 0 : index
    %c0_16 = arith.constant 0 : index
    %33 = vector.load %arg3[%c0_14, %c0_15, %c0_16] : memref<4x18x72xf32, #tpu.memory_space<vmem>>, vector<1x18x72xf32>
    %34 = vector.shape_cast %33 : vector<1x18x72xf32> to vector<18x72xf32>
    %cst_17 = arith.constant dense<0.000000e+00> : vector<8x72xf32>
    %35 = tpu.matmul %32, %34, %cst_17 {dimension_numbers = #tpu.dot_dimension_numbers<[1], [0], [0], [1], [0, 0, 1, 1], [], []>} : vector<8x18xf32>, vector<18x72xf32>, vector<8x72xf32> -> vector<8x72xf32>
    %36 = arith.addf %9, %35 : vector<8x72xf32>
    %37 = vector.extract_strided_slice %4 {offsets = [0, 18], sizes = [8, 18], strides = [1, 1]} : vector<16x216xf32> to vector<8x18xf32>
    %38 = vector.extract_strided_slice %4 {offsets = [0, 90], sizes = [8, 18], strides = [1, 1]} : vector<16x216xf32> to vector<8x18xf32>
    %39 = vector.extract_strided_slice %4 {offsets = [0, 162], sizes = [8, 18], strides = [1, 1]} : vector<16x216xf32> to vector<8x18xf32>
    %cst_18 = arith.constant dense<0.000000e+00> : vector<8x8xf32>
    %40 = tpu.matmul %37, %38, %cst_18 {dimension_numbers = #tpu.dot_dimension_numbers<[1], [1], [0], [0], [0, 0, 1, 0], [], []>} : vector<8x18xf32>, vector<8x18xf32>, vector<8x8xf32> -> vector<8x8xf32>
    %41 = vector.broadcast %2 : f32 to vector<8x8xf32>
    %42 = arith.mulf %40, %41 : vector<8x8xf32>
    %cst_19 = arith.constant -1.000000e+30 : f32
    %43 = vector.broadcast %cst_19 : f32 to vector<8x8xf32>
    %44 = arith.select %7, %42, %43 : vector<8x8xi1>, vector<8x8xf32>
    %cst_20 = arith.constant dense<0xFF800000> : vector<8xf32>
    %45 = vector.multi_reduction <maximumf>, %44, %cst_20 [1] : vector<8x8xf32> to vector<8xf32>
    %46 = vector.shape_cast %45 : vector<8xf32> to vector<8x1xf32>
    %47 = vector.broadcast %46 : vector<8x1xf32> to vector<8x8xf32>
    %48 = arith.subf %44, %47 : vector<8x8xf32>
    %49 = math.exp %48 : vector<8x8xf32>
    %cst_21 = arith.constant dense<0.000000e+00> : vector<8xf32>
    %50 = vector.multi_reduction <add>, %49, %cst_21 [1] : vector<8x8xf32> to vector<8xf32>
    %51 = vector.shape_cast %50 : vector<8xf32> to vector<8x1xf32>
    %52 = tpu.reciprocal %51 {approx = true} : vector<8x1xf32> -> vector<8x1xf32>
    %53 = arith.mulf %51, %52 : vector<8x1xf32>
    %cst_22 = arith.constant 2.000000e+00 : f32
    %54 = vector.broadcast %cst_22 : f32 to vector<8x1xf32>
    %55 = arith.subf %54, %53 : vector<8x1xf32>
    %56 = arith.mulf %52, %55 : vector<8x1xf32>
    %57 = vector.broadcast %56 : vector<8x1xf32> to vector<8x8xf32>
    %58 = arith.mulf %49, %57 : vector<8x8xf32>
    %cst_23 = arith.constant dense<0.000000e+00> : vector<8x18xf32>
    %59 = tpu.matmul %58, %39, %cst_23 {dimension_numbers = #tpu.dot_dimension_numbers<[1], [0], [0], [1], [0, 0, 1, 1], [], []>} : vector<8x8xf32>, vector<8x18xf32>, vector<8x18xf32> -> vector<8x18xf32>
    %c1 = arith.constant 1 : index
    %c0_24 = arith.constant 0 : index
    %c0_25 = arith.constant 0 : index
    %60 = vector.load %arg3[%c1, %c0_24, %c0_25] : memref<4x18x72xf32, #tpu.memory_space<vmem>>, vector<1x18x72xf32>
    %61 = vector.shape_cast %60 : vector<1x18x72xf32> to vector<18x72xf32>
    %cst_26 = arith.constant dense<0.000000e+00> : vector<8x72xf32>
    %62 = tpu.matmul %59, %61, %cst_26 {dimension_numbers = #tpu.dot_dimension_numbers<[1], [0], [0], [1], [0, 0, 1, 1], [], []>} : vector<8x18xf32>, vector<18x72xf32>, vector<8x72xf32> -> vector<8x72xf32>
    %63 = arith.addf %36, %62 : vector<8x72xf32>
    %64 = vector.extract_strided_slice %4 {offsets = [0, 36], sizes = [8, 18], strides = [1, 1]} : vector<16x216xf32> to vector<8x18xf32>
    %65 = vector.extract_strided_slice %4 {offsets = [0, 108], sizes = [8, 18], strides = [1, 1]} : vector<16x216xf32> to vector<8x18xf32>
    %66 = vector.extract_strided_slice %4 {offsets = [0, 180], sizes = [8, 18], strides = [1, 1]} : vector<16x216xf32> to vector<8x18xf32>
    %cst_27 = arith.constant dense<0.000000e+00> : vector<8x8xf32>
    %67 = tpu.matmul %64, %65, %cst_27 {dimension_numbers = #tpu.dot_dimension_numbers<[1], [1], [0], [0], [0, 0, 1, 0], [], []>} : vector<8x18xf32>, vector<8x18xf32>, vector<8x8xf32> -> vector<8x8xf32>
    %68 = vector.broadcast %2 : f32 to vector<8x8xf32>
    %69 = arith.mulf %67, %68 : vector<8x8xf32>
    %cst_28 = arith.constant -1.000000e+30 : f32
    %70 = vector.broadcast %cst_28 : f32 to vector<8x8xf32>
    %71 = arith.select %7, %69, %70 : vector<8x8xi1>, vector<8x8xf32>
    %cst_29 = arith.constant dense<0xFF800000> : vector<8xf32>
    %72 = vector.multi_reduction <maximumf>, %71, %cst_29 [1] : vector<8x8xf32> to vector<8xf32>
    %73 = vector.shape_cast %72 : vector<8xf32> to vector<8x1xf32>
    %74 = vector.broadcast %73 : vector<8x1xf32> to vector<8x8xf32>
    %75 = arith.subf %71, %74 : vector<8x8xf32>
    %76 = math.exp %75 : vector<8x8xf32>
    %cst_30 = arith.constant dense<0.000000e+00> : vector<8xf32>
    %77 = vector.multi_reduction <add>, %76, %cst_30 [1] : vector<8x8xf32> to vector<8xf32>
    %78 = vector.shape_cast %77 : vector<8xf32> to vector<8x1xf32>
    %79 = tpu.reciprocal %78 {approx = true} : vector<8x1xf32> -> vector<8x1xf32>
    %80 = arith.mulf %78, %79 : vector<8x1xf32>
    %cst_31 = arith.constant 2.000000e+00 : f32
    %81 = vector.broadcast %cst_31 : f32 to vector<8x1xf32>
    %82 = arith.subf %81, %80 : vector<8x1xf32>
    %83 = arith.mulf %79, %82 : vector<8x1xf32>
    %84 = vector.broadcast %83 : vector<8x1xf32> to vector<8x8xf32>
    %85 = arith.mulf %76, %84 : vector<8x8xf32>
    %cst_32 = arith.constant dense<0.000000e+00> : vector<8x18xf32>
    %86 = tpu.matmul %85, %66, %cst_32 {dimension_numbers = #tpu.dot_dimension_numbers<[1], [0], [0], [1], [0, 0, 1, 1], [], []>} : vector<8x8xf32>, vector<8x18xf32>, vector<8x18xf32> -> vector<8x18xf32>
    %c2 = arith.constant 2 : index
    %c0_33 = arith.constant 0 : index
    %c0_34 = arith.constant 0 : index
    %87 = vector.load %arg3[%c2, %c0_33, %c0_34] : memref<4x18x72xf32, #tpu.memory_space<vmem>>, vector<1x18x72xf32>
    %88 = vector.shape_cast %87 : vector<1x18x72xf32> to vector<18x72xf32>
    %cst_35 = arith.constant dense<0.000000e+00> : vector<8x72xf32>
    %89 = tpu.matmul %86, %88, %cst_35 {dimension_numbers = #tpu.dot_dimension_numbers<[1], [0], [0], [1], [0, 0, 1, 1], [], []>} : vector<8x18xf32>, vector<18x72xf32>, vector<8x72xf32> -> vector<8x72xf32>
    %90 = arith.addf %63, %89 : vector<8x72xf32>
    %91 = vector.extract_strided_slice %4 {offsets = [0, 54], sizes = [8, 18], strides = [1, 1]} : vector<16x216xf32> to vector<8x18xf32>
    %92 = vector.extract_strided_slice %4 {offsets = [0, 126], sizes = [8, 18], strides = [1, 1]} : vector<16x216xf32> to vector<8x18xf32>
    %93 = vector.extract_strided_slice %4 {offsets = [0, 198], sizes = [8, 18], strides = [1, 1]} : vector<16x216xf32> to vector<8x18xf32>
    %cst_36 = arith.constant dense<0.000000e+00> : vector<8x8xf32>
    %94 = tpu.matmul %91, %92, %cst_36 {dimension_numbers = #tpu.dot_dimension_numbers<[1], [1], [0], [0], [0, 0, 1, 0], [], []>} : vector<8x18xf32>, vector<8x18xf32>, vector<8x8xf32> -> vector<8x8xf32>
    %95 = vector.broadcast %2 : f32 to vector<8x8xf32>
    %96 = arith.mulf %94, %95 : vector<8x8xf32>
    %cst_37 = arith.constant -1.000000e+30 : f32
    %97 = vector.broadcast %cst_37 : f32 to vector<8x8xf32>
    %98 = arith.select %7, %96, %97 : vector<8x8xi1>, vector<8x8xf32>
    %cst_38 = arith.constant dense<0xFF800000> : vector<8xf32>
    %99 = vector.multi_reduction <maximumf>, %98, %cst_38 [1] : vector<8x8xf32> to vector<8xf32>
    %100 = vector.shape_cast %99 : vector<8xf32> to vector<8x1xf32>
    %101 = vector.broadcast %100 : vector<8x1xf32> to vector<8x8xf32>
    %102 = arith.subf %98, %101 : vector<8x8xf32>
    %103 = math.exp %102 : vector<8x8xf32>
    %cst_39 = arith.constant dense<0.000000e+00> : vector<8xf32>
    %104 = vector.multi_reduction <add>, %103, %cst_39 [1] : vector<8x8xf32> to vector<8xf32>
    %105 = vector.shape_cast %104 : vector<8xf32> to vector<8x1xf32>
    %106 = tpu.reciprocal %105 {approx = true} : vector<8x1xf32> -> vector<8x1xf32>
    %107 = arith.mulf %105, %106 : vector<8x1xf32>
    %cst_40 = arith.constant 2.000000e+00 : f32
    %108 = vector.broadcast %cst_40 : f32 to vector<8x1xf32>
    %109 = arith.subf %108, %107 : vector<8x1xf32>
    %110 = arith.mulf %106, %109 : vector<8x1xf32>
    %111 = vector.broadcast %110 : vector<8x1xf32> to vector<8x8xf32>
    %112 = arith.mulf %103, %111 : vector<8x8xf32>
    %cst_41 = arith.constant dense<0.000000e+00> : vector<8x18xf32>
    %113 = tpu.matmul %112, %93, %cst_41 {dimension_numbers = #tpu.dot_dimension_numbers<[1], [0], [0], [1], [0, 0, 1, 1], [], []>} : vector<8x8xf32>, vector<8x18xf32>, vector<8x18xf32> -> vector<8x18xf32>
    %c3 = arith.constant 3 : index
    %c0_42 = arith.constant 0 : index
    %c0_43 = arith.constant 0 : index
    %114 = vector.load %arg3[%c3, %c0_42, %c0_43] : memref<4x18x72xf32, #tpu.memory_space<vmem>>, vector<1x18x72xf32>
    %115 = vector.shape_cast %114 : vector<1x18x72xf32> to vector<18x72xf32>
    %cst_44 = arith.constant dense<0.000000e+00> : vector<8x72xf32>
    %116 = tpu.matmul %113, %115, %cst_44 {dimension_numbers = #tpu.dot_dimension_numbers<[1], [0], [0], [1], [0, 0, 1, 1], [], []>} : vector<8x18xf32>, vector<18x72xf32>, vector<8x72xf32> -> vector<8x72xf32>
    %117 = arith.addf %90, %116 : vector<8x72xf32>
    %118 = vector.broadcast %8 : vector<1x72xf32> to vector<8x72xf32>
    %119 = arith.addf %117, %118 : vector<8x72xf32>
    %c0_45 = arith.constant 0 : index
    %c0_46 = arith.constant 0 : index
    %120 = vector.load %arg5[%c0_45, %c0_46] : memref<16x72xf32, #tpu.memory_space<vmem>>, vector<8x72xf32>
    tpu.vector_store %arg5[%c0_45, %c0_46], %119 {strides = array<i32>} : memref<16x72xf32, #tpu.memory_space<vmem>>, vector<8x72xf32>,
    %cst_47 = arith.constant 0.000000e+00 : f32
    %121 = vector.broadcast %cst_47 : f32 to vector<8x72xf32>
    %122 = vector.extract_strided_slice %4 {offsets = [8, 0], sizes = [8, 18], strides = [1, 1]} : vector<16x216xf32> to vector<8x18xf32>
    %123 = vector.extract_strided_slice %4 {offsets = [8, 72], sizes = [8, 18], strides = [1, 1]} : vector<16x216xf32> to vector<8x18xf32>
    %124 = vector.extract_strided_slice %4 {offsets = [8, 144], sizes = [8, 18], strides = [1, 1]} : vector<16x216xf32> to vector<8x18xf32>
    %cst_48 = arith.constant dense<0.000000e+00> : vector<8x8xf32>
    %125 = tpu.matmul %122, %123, %cst_48 {dimension_numbers = #tpu.dot_dimension_numbers<[1], [1], [0], [0], [0, 0, 1, 0], [], []>} : vector<8x18xf32>, vector<8x18xf32>, vector<8x8xf32> -> vector<8x8xf32>
    %126 = vector.broadcast %2 : f32 to vector<8x8xf32>
    %127 = arith.mulf %125, %126 : vector<8x8xf32>
    %cst_49 = arith.constant -1.000000e+30 : f32
    %128 = vector.broadcast %cst_49 : f32 to vector<8x8xf32>
    %129 = arith.select %7, %127, %128 : vector<8x8xi1>, vector<8x8xf32>
    %cst_50 = arith.constant dense<0xFF800000> : vector<8xf32>
    %130 = vector.multi_reduction <maximumf>, %129, %cst_50 [1] : vector<8x8xf32> to vector<8xf32>
    %131 = vector.shape_cast %130 : vector<8xf32> to vector<8x1xf32>
    %132 = vector.broadcast %131 : vector<8x1xf32> to vector<8x8xf32>
    %133 = arith.subf %129, %132 : vector<8x8xf32>
    %134 = math.exp %133 : vector<8x8xf32>
    %cst_51 = arith.constant dense<0.000000e+00> : vector<8xf32>
    %135 = vector.multi_reduction <add>, %134, %cst_51 [1] : vector<8x8xf32> to vector<8xf32>
    %136 = vector.shape_cast %135 : vector<8xf32> to vector<8x1xf32>
    %137 = tpu.reciprocal %136 {approx = true} : vector<8x1xf32> -> vector<8x1xf32>
    %138 = arith.mulf %136, %137 : vector<8x1xf32>
    %cst_52 = arith.constant 2.000000e+00 : f32
    %139 = vector.broadcast %cst_52 : f32 to vector<8x1xf32>
    %140 = arith.subf %139, %138 : vector<8x1xf32>
    %141 = arith.mulf %137, %140 : vector<8x1xf32>
    %142 = vector.broadcast %141 : vector<8x1xf32> to vector<8x8xf32>
    %143 = arith.mulf %134, %142 : vector<8x8xf32>
    %cst_53 = arith.constant dense<0.000000e+00> : vector<8x18xf32>
    %144 = tpu.matmul %143, %124, %cst_53 {dimension_numbers = #tpu.dot_dimension_numbers<[1], [0], [0], [1], [0, 0, 1, 1], [], []>} : vector<8x8xf32>, vector<8x18xf32>, vector<8x18xf32> -> vector<8x18xf32>
    %c0_54 = arith.constant 0 : index
    %c0_55 = arith.constant 0 : index
    %c0_56 = arith.constant 0 : index
    %145 = vector.load %arg3[%c0_54, %c0_55, %c0_56] : memref<4x18x72xf32, #tpu.memory_space<vmem>>, vector<1x18x72xf32>
    %146 = vector.shape_cast %145 : vector<1x18x72xf32> to vector<18x72xf32>
    %cst_57 = arith.constant dense<0.000000e+00> : vector<8x72xf32>
    %147 = tpu.matmul %144, %146, %cst_57 {dimension_numbers = #tpu.dot_dimension_numbers<[1], [0], [0], [1], [0, 0, 1, 1], [], []>} : vector<8x18xf32>, vector<18x72xf32>, vector<8x72xf32> -> vector<8x72xf32>
    %148 = arith.addf %121, %147 : vector<8x72xf32>
    %149 = vector.extract_strided_slice %4 {offsets = [8, 18], sizes = [8, 18], strides = [1, 1]} : vector<16x216xf32> to vector<8x18xf32>
    %150 = vector.extract_strided_slice %4 {offsets = [8, 90], sizes = [8, 18], strides = [1, 1]} : vector<16x216xf32> to vector<8x18xf32>
    %151 = vector.extract_strided_slice %4 {offsets = [8, 162], sizes = [8, 18], strides = [1, 1]} : vector<16x216xf32> to vector<8x18xf32>
    %cst_58 = arith.constant dense<0.000000e+00> : vector<8x8xf32>
    %152 = tpu.matmul %149, %150, %cst_58 {dimension_numbers = #tpu.dot_dimension_numbers<[1], [1], [0], [0], [0, 0, 1, 0], [], []>} : vector<8x18xf32>, vector<8x18xf32>, vector<8x8xf32> -> vector<8x8xf32>
    %153 = vector.broadcast %2 : f32 to vector<8x8xf32>
    %154 = arith.mulf %152, %153 : vector<8x8xf32>
    %cst_59 = arith.constant -1.000000e+30 : f32
    %155 = vector.broadcast %cst_59 : f32 to vector<8x8xf32>
    %156 = arith.select %7, %154, %155 : vector<8x8xi1>, vector<8x8xf32>
    %cst_60 = arith.constant dense<0xFF800000> : vector<8xf32>
    %157 = vector.multi_reduction <maximumf>, %156, %cst_60 [1] : vector<8x8xf32> to vector<8xf32>
    %158 = vector.shape_cast %157 : vector<8xf32> to vector<8x1xf32>
    %159 = vector.broadcast %158 : vector<8x1xf32> to vector<8x8xf32>
    %160 = arith.subf %156, %159 : vector<8x8xf32>
    %161 = math.exp %160 : vector<8x8xf32>
    %cst_61 = arith.constant dense<0.000000e+00> : vector<8xf32>
    %162 = vector.multi_reduction <add>, %161, %cst_61 [1] : vector<8x8xf32> to vector<8xf32>
    %163 = vector.shape_cast %162 : vector<8xf32> to vector<8x1xf32>
    %164 = tpu.reciprocal %163 {approx = true} : vector<8x1xf32> -> vector<8x1xf32>
    %165 = arith.mulf %163, %164 : vector<8x1xf32>
    %cst_62 = arith.constant 2.000000e+00 : f32
    %166 = vector.broadcast %cst_62 : f32 to vector<8x1xf32>
    %167 = arith.subf %166, %165 : vector<8x1xf32>
    %168 = arith.mulf %164, %167 : vector<8x1xf32>
    %169 = vector.broadcast %168 : vector<8x1xf32> to vector<8x8xf32>
    %170 = arith.mulf %161, %169 : vector<8x8xf32>
    %cst_63 = arith.constant dense<0.000000e+00> : vector<8x18xf32>
    %171 = tpu.matmul %170, %151, %cst_63 {dimension_numbers = #tpu.dot_dimension_numbers<[1], [0], [0], [1], [0, 0, 1, 1], [], []>} : vector<8x8xf32>, vector<8x18xf32>, vector<8x18xf32> -> vector<8x18xf32>
    %c1_64 = arith.constant 1 : index
    %c0_65 = arith.constant 0 : index
    %c0_66 = arith.constant 0 : index
    %172 = vector.load %arg3[%c1_64, %c0_65, %c0_66] : memref<4x18x72xf32, #tpu.memory_space<vmem>>, vector<1x18x72xf32>
    %173 = vector.shape_cast %172 : vector<1x18x72xf32> to vector<18x72xf32>
    %cst_67 = arith.constant dense<0.000000e+00> : vector<8x72xf32>
    %174 = tpu.matmul %171, %173, %cst_67 {dimension_numbers = #tpu.dot_dimension_numbers<[1], [0], [0], [1], [0, 0, 1, 1], [], []>} : vector<8x18xf32>, vector<18x72xf32>, vector<8x72xf32> -> vector<8x72xf32>
    %175 = arith.addf %148, %174 : vector<8x72xf32>
    %176 = vector.extract_strided_slice %4 {offsets = [8, 36], sizes = [8, 18], strides = [1, 1]} : vector<16x216xf32> to vector<8x18xf32>
    %177 = vector.extract_strided_slice %4 {offsets = [8, 108], sizes = [8, 18], strides = [1, 1]} : vector<16x216xf32> to vector<8x18xf32>
    %178 = vector.extract_strided_slice %4 {offsets = [8, 180], sizes = [8, 18], strides = [1, 1]} : vector<16x216xf32> to vector<8x18xf32>
    %cst_68 = arith.constant dense<0.000000e+00> : vector<8x8xf32>
    %179 = tpu.matmul %176, %177, %cst_68 {dimension_numbers = #tpu.dot_dimension_numbers<[1], [1], [0], [0], [0, 0, 1, 0], [], []>} : vector<8x18xf32>, vector<8x18xf32>, vector<8x8xf32> -> vector<8x8xf32>
    %180 = vector.broadcast %2 : f32 to vector<8x8xf32>
    %181 = arith.mulf %179, %180 : vector<8x8xf32>
    %cst_69 = arith.constant -1.000000e+30 : f32
    %182 = vector.broadcast %cst_69 : f32 to vector<8x8xf32>
    %183 = arith.select %7, %181, %182 : vector<8x8xi1>, vector<8x8xf32>
    %cst_70 = arith.constant dense<0xFF800000> : vector<8xf32>
    %184 = vector.multi_reduction <maximumf>, %183, %cst_70 [1] : vector<8x8xf32> to vector<8xf32>
    %185 = vector.shape_cast %184 : vector<8xf32> to vector<8x1xf32>
    %186 = vector.broadcast %185 : vector<8x1xf32> to vector<8x8xf32>
    %187 = arith.subf %183, %186 : vector<8x8xf32>
    %188 = math.exp %187 : vector<8x8xf32>
    %cst_71 = arith.constant dense<0.000000e+00> : vector<8xf32>
    %189 = vector.multi_reduction <add>, %188, %cst_71 [1] : vector<8x8xf32> to vector<8xf32>
    %190 = vector.shape_cast %189 : vector<8xf32> to vector<8x1xf32>
    %191 = tpu.reciprocal %190 {approx = true} : vector<8x1xf32> -> vector<8x1xf32>
    %192 = arith.mulf %190, %191 : vector<8x1xf32>
    %cst_72 = arith.constant 2.000000e+00 : f32
    %193 = vector.broadcast %cst_72 : f32 to vector<8x1xf32>
    %194 = arith.subf %193, %192 : vector<8x1xf32>
    %195 = arith.mulf %191, %194 : vector<8x1xf32>
    %196 = vector.broadcast %195 : vector<8x1xf32> to vector<8x8xf32>
    %197 = arith.mulf %188, %196 : vector<8x8xf32>
    %cst_73 = arith.constant dense<0.000000e+00> : vector<8x18xf32>
    %198 = tpu.matmul %197, %178, %cst_73 {dimension_numbers = #tpu.dot_dimension_numbers<[1], [0], [0], [1], [0, 0, 1, 1], [], []>} : vector<8x8xf32>, vector<8x18xf32>, vector<8x18xf32> -> vector<8x18xf32>
    %c2_74 = arith.constant 2 : index
    %c0_75 = arith.constant 0 : index
    %c0_76 = arith.constant 0 : index
    %199 = vector.load %arg3[%c2_74, %c0_75, %c0_76] : memref<4x18x72xf32, #tpu.memory_space<vmem>>, vector<1x18x72xf32>
    %200 = vector.shape_cast %199 : vector<1x18x72xf32> to vector<18x72xf32>
    %cst_77 = arith.constant dense<0.000000e+00> : vector<8x72xf32>
    %201 = tpu.matmul %198, %200, %cst_77 {dimension_numbers = #tpu.dot_dimension_numbers<[1], [0], [0], [1], [0, 0, 1, 1], [], []>} : vector<8x18xf32>, vector<18x72xf32>, vector<8x72xf32> -> vector<8x72xf32>
    %202 = arith.addf %175, %201 : vector<8x72xf32>
    %203 = vector.extract_strided_slice %4 {offsets = [8, 54], sizes = [8, 18], strides = [1, 1]} : vector<16x216xf32> to vector<8x18xf32>
    %204 = vector.extract_strided_slice %4 {offsets = [8, 126], sizes = [8, 18], strides = [1, 1]} : vector<16x216xf32> to vector<8x18xf32>
    %205 = vector.extract_strided_slice %4 {offsets = [8, 198], sizes = [8, 18], strides = [1, 1]} : vector<16x216xf32> to vector<8x18xf32>
    %cst_78 = arith.constant dense<0.000000e+00> : vector<8x8xf32>
    %206 = tpu.matmul %203, %204, %cst_78 {dimension_numbers = #tpu.dot_dimension_numbers<[1], [1], [0], [0], [0, 0, 1, 0], [], []>} : vector<8x18xf32>, vector<8x18xf32>, vector<8x8xf32> -> vector<8x8xf32>
    %207 = vector.broadcast %2 : f32 to vector<8x8xf32>
    %208 = arith.mulf %206, %207 : vector<8x8xf32>
    %cst_79 = arith.constant -1.000000e+30 : f32
    %209 = vector.broadcast %cst_79 : f32 to vector<8x8xf32>
    %210 = arith.select %7, %208, %209 : vector<8x8xi1>, vector<8x8xf32>
    %cst_80 = arith.constant dense<0xFF800000> : vector<8xf32>
    %211 = vector.multi_reduction <maximumf>, %210, %cst_80 [1] : vector<8x8xf32> to vector<8xf32>
    %212 = vector.shape_cast %211 : vector<8xf32> to vector<8x1xf32>
    %213 = vector.broadcast %212 : vector<8x1xf32> to vector<8x8xf32>
    %214 = arith.subf %210, %213 : vector<8x8xf32>
    %215 = math.exp %214 : vector<8x8xf32>
    %cst_81 = arith.constant dense<0.000000e+00> : vector<8xf32>
    %216 = vector.multi_reduction <add>, %215, %cst_81 [1] : vector<8x8xf32> to vector<8xf32>
    %217 = vector.shape_cast %216 : vector<8xf32> to vector<8x1xf32>
    %218 = tpu.reciprocal %217 {approx = true} : vector<8x1xf32> -> vector<8x1xf32>
    %219 = arith.mulf %217, %218 : vector<8x1xf32>
    %cst_82 = arith.constant 2.000000e+00 : f32
    %220 = vector.broadcast %cst_82 : f32 to vector<8x1xf32>
    %221 = arith.subf %220, %219 : vector<8x1xf32>
    %222 = arith.mulf %218, %221 : vector<8x1xf32>
    %223 = vector.broadcast %222 : vector<8x1xf32> to vector<8x8xf32>
    %224 = arith.mulf %215, %223 : vector<8x8xf32>
    %cst_83 = arith.constant dense<0.000000e+00> : vector<8x18xf32>
    %225 = tpu.matmul %224, %205, %cst_83 {dimension_numbers = #tpu.dot_dimension_numbers<[1], [0], [0], [1], [0, 0, 1, 1], [], []>} : vector<8x8xf32>, vector<8x18xf32>, vector<8x18xf32> -> vector<8x18xf32>
    %c3_84 = arith.constant 3 : index
    %c0_85 = arith.constant 0 : index
    %c0_86 = arith.constant 0 : index
    %226 = vector.load %arg3[%c3_84, %c0_85, %c0_86] : memref<4x18x72xf32, #tpu.memory_space<vmem>>, vector<1x18x72xf32>
    %227 = vector.shape_cast %226 : vector<1x18x72xf32> to vector<18x72xf32>
    %cst_87 = arith.constant dense<0.000000e+00> : vector<8x72xf32>
    %228 = tpu.matmul %225, %227, %cst_87 {dimension_numbers = #tpu.dot_dimension_numbers<[1], [0], [0], [1], [0, 0, 1, 1], [], []>} : vector<8x18xf32>, vector<18x72xf32>, vector<8x72xf32> -> vector<8x72xf32>
    %229 = arith.addf %202, %228 : vector<8x72xf32>
    %230 = vector.broadcast %8 : vector<1x72xf32> to vector<8x72xf32>
    %231 = arith.addf %229, %230 : vector<8x72xf32>
    %c8 = arith.constant 8 : index
    %c0_88 = arith.constant 0 : index
    %232 = vector.load %arg5[%c8, %c0_88] : memref<16x72xf32, #tpu.memory_space<vmem>>, vector<8x72xf32>
    tpu.vector_store %arg5[%c8, %c0_88], %231 {strides = array<i32>} : memref<16x72xf32, #tpu.memory_space<vmem>>, vector<8x72xf32>,
    return
  }
  func.func @transform_0(%arg0: i32) -> (i32, i32) {
    %c0_i32 = arith.constant 0 : i32
    %c0_i32_0 = arith.constant 0 : i32
    %c0_i32_1 = arith.constant 0 : i32
    return %c0_i32, %c0_i32_0 : i32, i32
  }
  func.func @transform_1(%arg0: i32) -> (i32, i32) {
    %c0_i32 = arith.constant 0 : i32
    %c0_i32_0 = arith.constant 0 : i32
    %c0_i32_1 = arith.constant 0 : i32
    return %c0_i32, %c0_i32_0 : i32, i32
  }
  func.func @transform_2(%arg0: i32) -> (i32, i32, i32) {
    %c0_i32 = arith.constant 0 : i32
    %c0_i32_0 = arith.constant 0 : i32
    %c0_i32_1 = arith.constant 0 : i32
    %c0_i32_2 = arith.constant 0 : i32
    return %c0_i32, %c0_i32_0, %c0_i32_1 : i32, i32, i32
  }
  func.func @transform_3(%arg0: i32) -> (i32, i32) {
    %c0_i32 = arith.constant 0 : i32
    %c0_i32_0 = arith.constant 0 : i32
    %c0_i32_1 = arith.constant 0 : i32
    return %c0_i32, %c0_i32_0 : i32, i32
  }
  func.func @transform_4(%arg0: i32) -> (i32, i32) {
    %c0_i32 = arith.constant 0 : i32
    %c0_i32_0 = arith.constant 0 : i32
    %c0_i32_1 = arith.constant 0 : i32
    return %c0_i32, %c0_i32_0 : i32, i32
  }
}

</mosaic_0001>

<llo_original>
// kernel: multi_head_attention.1
$region0: #{multi_head_attention.1}
  #allocation0 [shape = 'u32[]', space=smem, size = 0x4, offset = 0x4, fixed_abs, tag = 'smem constant byte address 0x4 - core index']
  #allocation1 [shape = 'u32[144,128]{1,0:T(1,128)}', space=vmem, size = 0x12000, scoped, tag = 'internal scratch']
  %s0 = inlined_call_operand.vmem [shape: f32[16,72], index: 0, kind: input, shape index: {}]
  %s1 = inlined_call_operand.vmem [shape: f32[72,216], index: 1, kind: input, shape index: {}]
  %s2 = inlined_call_operand.vmem [shape: f32[4,18,72], index: 2, kind: input, shape index: {}]
  %s3 = inlined_call_operand.vmem [shape: f32[1,72], index: 3, kind: input, shape index: {}]
  %s4 = inlined_call_operand.hbm [shape: f32[16,72], index: 4, kind: output, shape index: {}]
  %s5 = sld [smem:[#allocation0]]
  $region26: #{multi_head_attention.1} parent=0
    _
  %s7 = ssub.s32 1, %s5
  %s8 = scalar_select 0, %s7, %s5
  $region1: #{multi_head_attention.1} parent=0
    #allocation2 [shape = 'u8[8192]{0}', space=vmem, size = 0x2000, scoped, tag = 'output window, operand 0, single buffered']
    #allocation3 [shape = 's32[1]{0}', space=sflag, size = 0x4, scoped, tag = 'scoped memory for multi_head_attention.1']
    %9 = vsyncpa [#allocation3], 0
    // Predicated region
    $region2: #{multi_head_attention.1} parent=1 // pred_check
      _
    $region3: #{multi_head_attention.1} parent=1 // pred_check_branch
      %11 = sbr.rel (0) target = $region5
    $region4: #{multi_head_attention.1} parent=1 // pred_region
      _
    $region5: #{multi_head_attention.1} parent=1 // pred_fallthru
      _
    // Predicated region
    $region6: #{multi_head_attention.1} parent=1 // pred_check
      _
    $region7: #{multi_head_attention.1} parent=1 // pred_check_branch
      %13 = sbr.rel (0) target = $region9
    $region8: #{multi_head_attention.1} parent=1 // pred_region
      _
    $region9: #{multi_head_attention.1} parent=1 // pred_fallthru
      _
    // Predicated region
    $region10: #{multi_head_attention.1} parent=1 // pred_check
      _
    $region11: #{multi_head_attention.1} parent=1 // pred_check_branch
      %15 = sbr.rel (0) target = $region13
    $region12: #{multi_head_attention.1} parent=1 // pred_region
      _
    $region13: #{multi_head_attention.1} parent=1 // pred_fallthru
      _
    // Predicated region
    $region14: #{multi_head_attention.1} parent=1 // pred_check
      _
    $region15: #{multi_head_attention.1} parent=1 // pred_check_branch
      %17 = sbr.rel (0) target = $region17
    $region16: #{multi_head_attention.1} parent=1 // pred_region
      _
    $region17: #{multi_head_attention.1} parent=1 // pred_fallthru
      _
    %v18 = vld [vmem:[%s0] sm:$0xff]
    %v19 = vld [vmem:[%s0 + $0x8] sm:$0xff]
    %v20 = vld [vmem:[%s1] sm:$0xff]
    %v21 = vld [vmem:[%s1 + $0x8] sm:$0xff]
    %v22 = vld [vmem:[%s1 + $0x10] sm:$0xff]
    %v23 = vld [vmem:[%s1 + $0x18] sm:$0xff]
    %v24 = vld [vmem:[%s1 + $0x20] sm:$0xff]
    %v25 = vld [vmem:[%s1 + $0x28] sm:$0xff]
    %v26 = vld [vmem:[%s1 + $0x30] sm:$0xff]
    %v27 = vld [vmem:[%s1 + $0x38] sm:$0xff]
    %v28 = vld [vmem:[%s1 + $0x40] sm:$0xff]
    %v29 = vld [vmem:[%s1 + $0x48] sm:$0xff]
    %v30 = vld [vmem:[%s1 + $0x50] sm:$0xff]
    %v31 = vld [vmem:[%s1 + $0x58] sm:$0xff]
    %v32 = vld [vmem:[%s1 + $0x60] sm:$0xff]
    %v33 = vld [vmem:[%s1 + $0x68] sm:$0xff]
    %v34 = vld [vmem:[%s1 + $0x70] sm:$0xff]
    %v35 = vld [vmem:[%s1 + $0x78] sm:$0xff]
    %v36 = vld [vmem:[%s1 + $0x80] sm:$0xff]
    %v37 = vld [vmem:[%s1 + $0x88] sm:$0xff]
    %vm38 = vcmask 588800
    %v40 = vsel %vm38, %v18, 0
    %v43 = vsel %vm38, %v19, 0
    %45 = vmatprep.subr.mxu0 %v21
    %46 = vmatpush1.msra.mxu0 %v20
    %47 = vmatprep.subr.mxu0 %v23
    %48 = vmatpush1.msra.mxu0 %v22
    %49 = vmatprep.subr.mxu0 %v25
    %50 = vmatpush1.msra.mxu0 %v24
    %51 = vmatprep.subr.mxu0 %v27
    %52 = vmatpush1.msra.mxu0 %v26
    %53 = vmatprep.subr.mxu0 %v29
    %54 = vmatpush1.msra.mxu0 %v28
    %55 = vmatprep.subr.mxu0 %v31
    %56 = vmatpush1.msra.mxu0 %v30
    %57 = vmatprep.subr.mxu0 %v33
    %58 = vmatpush1.msra.mxu0 %v32
    %59 = vmatprep.subr.mxu0 %v35
    %60 = vmatpush1.msra.mxu0 %v34
    %61 = vmatprep.subr.mxu0 %v37
    %62 = vmatpush1.msra.mxu0 %v36
    %63 = vmatprep.subr.mxu0 0.0
    %64 = vmatpush1.msra.mxu0 0.0
    %65 = vmatprep.subr.mxu0 0.0
    %66 = vmatpush1.msra.mxu0 0.0
    %67 = vmatprep.subr.mxu0 0.0
    %68 = vmatpush1.msra.mxu0 0.0
    %69 = vmatprep.subr.mxu0 0.0
    %70 = vmatpush1.msra.mxu0 0.0
    %71 = vmatprep.subr.mxu0 0.0
    %72 = vmatpush1.msra.mxu0 0.0
    %73 = vmatprep.subr.mxu0 0.0
    %74 = vmatpush1.msra.mxu0 0.0
    %75 = vmatprep.subr.mxu0 0.0
    %76 = vmatpush1.msra.mxu0 0.0
    %77 = vmatprep.subr.mxu0 0.0
    %78 = vmatpush1.msra.mxu0 0.0
    %79 = vmatprep.subr.mxu0 0.0
    %80 = vmatpush1.msra.mxu0 0.0
    %81 = vmatprep.subr.mxu0 0.0
    %82 = vmatpush1.msra.mxu0 0.0
    %83 = vmatprep.subr.mxu0 0.0
    %84 = vmatpush1.msra.mxu0 0.0
    %85 = vmatprep.subr.mxu0 0.0
    %86 = vmatpush1.msra.mxu0 0.0
    %87 = vmatprep.subr.mxu0 0.0
    %88 = vmatpush1.msra.mxu0 0.0
    %89 = vmatprep.subr.mxu0 0.0
    %90 = vmatpush1.msra.mxu0 0.0
    %91 = vmatprep.subr.mxu0 0.0
    %92 = vmatpush1.msra.mxu0 0.0
    %93 = vmatprep.subr.mxu0 0.0
    %94 = vmatpush1.msra.mxu0 0.0
    %95 = vmatprep.subr.mxu0 0.0
    %96 = vmatpush1.msra.mxu0 0.0
    %97 = vmatprep.subr.mxu0 0.0
    %98 = vmatpush1.msra.mxu0 0.0
    %99 = vmatprep.subr.mxu0 0.0
    %100 = vmatpush1.msra.mxu0 0.0
    %101 = vmatprep.subr.mxu0 0.0
    %102 = vmatpush1.msra.mxu0 0.0
    %103 = vmatprep.subr.mxu0 0.0
    %104 = vmatpush1.msra.mxu0 0.0
    %105 = vmatprep.subr.mxu0 0.0
    %106 = vmatpush1.msra.mxu0 0.0
    %107 = vmatprep.subr.mxu0 0.0
    %108 = vmatpush1.msra.mxu0 0.0
    %109 = vmatprep.mubr.f32.mxu0 0.0
    %110 = vmatmul.mubr.f32.gmra.mrb[0].mxu0 %v40
    %v111 = vpop.f32.mrb[0].mxu0
    %v112 = vadd.f32 0.0, %v111
    %v113 = vpop.f32.mrb[0].mxu0
    %v114 = vadd.f32 0.0, %v113
    %115 = vmatprep.mubr.f32.mxu0 0.0
    %116 = vmatmul.mubr.f32.gmra.mrb[0].mxu0 %v43
    %v117 = vpop.f32.mrb[0].mxu0
    %v118 = vadd.f32 0.0, %v117
    %v119 = vpop.f32.mrb[0].mxu0
    %v120 = vadd.f32 0.0, %v119
    %121 = vdwg.mxu0
    %v122 = vlaneseq
    %v123 = vshrl.u32 %v122, 7
    %v124 = vlaneseq
    %v125 = vand.u32 %v124, 127
    %vm126 = vcmp.ge.s32.totalorder %v123, %v125
    %v127 = vld [vmem:[%s3] sm:$0x1]
    %129 = vrot.lane.b32.xlu0 %v112, 56
    %v130 = vpop.permute.xlu0 %129
    %vm131 = vcmask 146432
    %v132 = vsel %vm131, %v112, 0
    %v134 = vsel %vm131, %v130, 0
    %136 = vmatprep.subr.mxu0 0.0
    %137 = vmatpush1.xpose.msra.mxu0 %v134
    %138 = vmatprep.subr.mxu0 0.0
    %139 = vmatpush1.xpose.msra.mxu0 0.0
    %140 = vmatprep.subr.mxu0 0.0
    %141 = vmatpush1.xpose.msra.mxu0 0.0
    %142 = vmatprep.subr.mxu0 0.0
    %143 = vmatpush1.xpose.msra.mxu0 0.0
    %144 = vmatprep.subr.mxu0 0.0
    %145 = vmatpush1.xpose.msra.mxu0 0.0
    %146 = vmatprep.subr.mxu0 0.0
    %147 = vmatpush1.xpose.msra.mxu0 0.0
    %148 = vmatprep.subr.mxu0 0.0
    %149 = vmatpush1.xpose.msra.mxu0 0.0
    %150 = vmatprep.subr.mxu0 0.0
    %151 = vmatpush1.xpose.msra.mxu0 0.0
    %152 = vmatprep.subr.mxu0 0.0
    %153 = vmatpush1.xpose.msra.mxu0 0.0
    %154 = vmatprep.subr.mxu0 0.0
    %155 = vmatpush1.xpose.msra.mxu0 0.0
    %156 = vmatprep.subr.mxu0 0.0
    %157 = vmatpush1.xpose.msra.mxu0 0.0
    %158 = vmatprep.subr.mxu0 0.0
    %159 = vmatpush1.xpose.msra.mxu0 0.0
    %160 = vmatprep.subr.mxu0 0.0
    %161 = vmatpush1.xpose.msra.mxu0 0.0
    %162 = vmatprep.subr.mxu0 0.0
    %163 = vmatpush1.xpose.msra.mxu0 0.0
    %164 = vmatprep.subr.mxu0 0.0
    %165 = vmatpush1.xpose.msra.mxu0 0.0
    %166 = vmatprep.subr.mxu0 0.0
    %167 = vmatpush1.xpose.msra.mxu0 0.0
    %168 = vmatprep.subr.mxu0 0.0
    %169 = vmatpush1.xpose.msra.mxu0 0.0
    %170 = vmatprep.subr.mxu0 0.0
    %171 = vmatpush1.xpose.msra.mxu0 0.0
    %172 = vmatprep.subr.mxu0 0.0
    %173 = vmatpush1.xpose.msra.mxu0 0.0
    %174 = vmatprep.subr.mxu0 0.0
    %175 = vmatpush1.xpose.msra.mxu0 0.0
    %176 = vmatprep.subr.mxu0 0.0
    %177 = vmatpush1.xpose.msra.mxu0 0.0
    %178 = vmatprep.subr.mxu0 0.0
    %179 = vmatpush1.xpose.msra.mxu0 0.0
    %180 = vmatprep.subr.mxu0 0.0
    %181 = vmatpush1.xpose.msra.mxu0 0.0
    %182 = vmatprep.subr.mxu0 0.0
    %183 = vmatpush1.xpose.msra.mxu0 0.0
    %184 = vmatprep.subr.mxu0 0.0
    %185 = vmatpush1.xpose.msra.mxu0 0.0
    %186 = vmatprep.subr.mxu0 0.0
    %187 = vmatpush1.xpose.msra.mxu0 0.0
    %188 = vmatprep.subr.mxu0 0.0
    %189 = vmatpush1.xpose.msra.mxu0 0.0
    %190 = vmatprep.subr.mxu0 0.0
    %191 = vmatpush1.xpose.msra.mxu0 0.0
    %192 = vmatprep.subr.mxu0 0.0
    %193 = vmatpush1.xpose.msra.mxu0 0.0
    %194 = vmatprep.subr.mxu0 0.0
    %195 = vmatpush1.xpose.msra.mxu0 0.0
    %196 = vmatprep.subr.mxu0 0.0
    %197 = vmatpush1.xpose.msra.mxu0 0.0
    %198 = vmatprep.subr.mxu0 0.0
    %199 = vmatpush1.xpose.msra.mxu0 0.0
    %200 = vmatprep.mubr.f32.mxu0 0.0
    %201 = vmatmul.mubr.f32.gmra.mrb[0].mxu0 %v132
    %v202 = vpop.f32.mrb[0].mxu0
    %v203 = vadd.f32 0.0, %v202
    %v204 = vpop.f32.mrb[0].mxu0
    %205 = vdwg.mxu0
    %v206 = vmul.f32 %v203, 0.11785114
    %v207 = vsel %vm126, %v206, -1e+30
    %vm208 = vcmask 64512
    %v209 = vsel %vm208, %v207, -inf
    %210 = vmax.xlane.f32.xlu0 %v209
    %v211 = vpop.xlane.xlu0 %210
    %v212 = vsub.f32 %v207, %v211
    %v213 = vmul.f32 %v212, 1.442695
    %v214 = vpow.pop %v213
    %v215 = vsel %vm208, %v214, 0.0
    %216 = vadd.xlane.f32.xlu0 %v215
    %v217 = vpop.xlane.xlu0 %216
    %v218 = vrcp.pop %v217
    %v219 = vmul.f32 %v217, %v218
    %v220 = vsub.f32 2.0, %v219
    %v221 = vmul.f32 %v218, %v220
    %v222 = vmul.f32 %v214, %v221
    %224 = vrot.lane.b32.xlu0 %v114, 112
    %v225 = vpop.permute.xlu0 %224
    %v228 = vsel %vm208, %v222, 0
    %230 = vmatprep.subr.mxu0 0.0
    %231 = vmatpush1.msra.mxu0 %v225
    %232 = vmatprep.subr.mxu0 0.0
    %233 = vmatpush1.msra.mxu0 0.0
    %234 = vmatprep.subr.mxu0 0.0
    %235 = vmatpush1.msra.mxu0 0.0
    %236 = vmatprep.subr.mxu0 0.0
    %237 = vmatpush1.msra.mxu0 0.0
    %238 = vmatprep.subr.mxu0 0.0
    %239 = vmatpush1.msra.mxu0 0.0
    %240 = vmatprep.subr.mxu0 0.0
    %241 = vmatpush1.msra.mxu0 0.0
    %242 = vmatprep.subr.mxu0 0.0
    %243 = vmatpush1.msra.mxu0 0.0
    %244 = vmatprep.subr.mxu0 0.0
    %245 = vmatpush1.msra.mxu0 0.0
    %246 = vmatprep.subr.mxu0 0.0
    %247 = vmatpush1.msra.mxu0 0.0
    %248 = vmatprep.subr.mxu0 0.0
    %249 = vmatpush1.msra.mxu0 0.0
    %250 = vmatprep.subr.mxu0 0.0
    %251 = vmatpush1.msra.mxu0 0.0
    %252 = vmatprep.subr.mxu0 0.0
    %253 = vmatpush1.msra.mxu0 0.0
    %254 = vmatprep.subr.mxu0 0.0
    %255 = vmatpush1.msra.mxu0 0.0
    %256 = vmatprep.subr.mxu0 0.0
    %257 = vmatpush1.msra.mxu0 0.0
    %258 = vmatprep.subr.mxu0 0.0
    %259 = vmatpush1.msra.mxu0 0.0
    %260 = vmatprep.subr.mxu0 0.0
    %261 = vmatpush1.msra.mxu0 0.0
    %262 = vmatprep.subr.mxu0 0.0
    %263 = vmatpush1.msra.mxu0 0.0
    %264 = vmatprep.subr.mxu0 0.0
    %265 = vmatpush1.msra.mxu0 0.0
    %266 = vmatprep.subr.mxu0 0.0
    %267 = vmatpush1.msra.mxu0 0.0
    %268 = vmatprep.subr.mxu0 0.0
    %269 = vmatpush1.msra.mxu0 0.0
    %270 = vmatprep.subr.mxu0 0.0
    %271 = vmatpush1.msra.mxu0 0.0
    %272 = vmatprep.subr.mxu0 0.0
    %273 = vmatpush1.msra.mxu0 0.0
    %274 = vmatprep.subr.mxu0 0.0
    %275 = vmatpush1.msra.mxu0 0.0
    %276 = vmatprep.subr.mxu0 0.0
    %277 = vmatpush1.msra.mxu0 0.0
    %278 = vmatprep.subr.mxu0 0.0
    %279 = vmatpush1.msra.mxu0 0.0
    %280 = vmatprep.subr.mxu0 0.0
    %281 = vmatpush1.msra.mxu0 0.0
    %282 = vmatprep.subr.mxu0 0.0
    %283 = vmatpush1.msra.mxu0 0.0
    %284 = vmatprep.subr.mxu0 0.0
    %285 = vmatpush1.msra.mxu0 0.0
    %286 = vmatprep.subr.mxu0 0.0
    %287 = vmatpush1.msra.mxu0 0.0
    %288 = vmatprep.subr.mxu0 0.0
    %289 = vmatpush1.msra.mxu0 0.0
    %290 = vmatprep.subr.mxu0 0.0
    %291 = vmatpush1.msra.mxu0 0.0
    %292 = vmatprep.subr.mxu0 0.0
    %293 = vmatpush1.msra.mxu0 0.0
    %294 = vmatprep.mubr.f32.mxu0 0.0
    %295 = vmatmul.mubr.f32.gmra.mrb[0].mxu0 %v228
    %v296 = vpop.f32.mrb[0].mxu0
    %v297 = vadd.f32 0.0, %v296
    %v298 = vpop.f32.mrb[0].mxu0
    %299 = vdwg.mxu0
    %v300 = vld [vmem:[%s2] sm:$0xff]
    %v301 = vld [vmem:[%s2 + $0x8] sm:$0xff]
    %v302 = vld [vmem:[%s2 + $0x10] sm:$0x3]
    %303 = vrot.lane.b32.xlu0 %v112, 110
    %v304 = vpop.permute.xlu0 %303
    %305 = vrot.lane.b32.xlu0 %v112, 38
    %v306 = vpop.permute.xlu0 %305
    %v307 = vsel %vm131, %v304, 0
    %v309 = vsel %vm131, %v306, 0
    %311 = vmatprep.subr.mxu0 0.0
    %312 = vmatpush1.xpose.msra.mxu0 %v309
    %313 = vmatprep.subr.mxu0 0.0
    %314 = vmatpush1.xpose.msra.mxu0 0.0
    %315 = vmatprep.subr.mxu0 0.0
    %316 = vmatpush1.xpose.msra.mxu0 0.0
    %317 = vmatprep.subr.mxu0 0.0
    %318 = vmatpush1.xpose.msra.mxu0 0.0
    %319 = vmatprep.subr.mxu0 0.0
    %320 = vmatpush1.xpose.msra.mxu0 0.0
    %321 = vmatprep.subr.mxu0 0.0
    %322 = vmatpush1.xpose.msra.mxu0 0.0
    %323 = vmatprep.subr.mxu0 0.0
    %324 = vmatpush1.xpose.msra.mxu0 0.0
    %325 = vmatprep.subr.mxu0 0.0
    %326 = vmatpush1.xpose.msra.mxu0 0.0
    %327 = vmatprep.subr.mxu0 0.0
    %328 = vmatpush1.xpose.msra.mxu0 0.0
    %329 = vmatprep.subr.mxu0 0.0
    %330 = vmatpush1.xpose.msra.mxu0 0.0
    %331 = vmatprep.subr.mxu0 0.0
    %332 = vmatpush1.xpose.msra.mxu0 0.0
    %333 = vmatprep.subr.mxu0 0.0
    %334 = vmatpush1.xpose.msra.mxu0 0.0
    %335 = vmatprep.subr.mxu0 0.0
    %336 = vmatpush1.xpose.msra.mxu0 0.0
    %337 = vmatprep.subr.mxu0 0.0
    %338 = vmatpush1.xpose.msra.mxu0 0.0
    %339 = vmatprep.subr.mxu0 0.0
    %340 = vmatpush1.xpose.msra.mxu0 0.0
    %341 = vmatprep.subr.mxu0 0.0
    %342 = vmatpush1.xpose.msra.mxu0 0.0
    %343 = vmatprep.subr.mxu0 0.0
    %344 = vmatpush1.xpose.msra.mxu0 0.0
    %345 = vmatprep.subr.mxu0 0.0
    %346 = vmatpush1.xpose.msra.mxu0 0.0
    %347 = vmatprep.subr.mxu0 0.0
    %348 = vmatpush1.xpose.msra.mxu0 0.0
    %349 = vmatprep.subr.mxu0 0.0
    %350 = vmatpush1.xpose.msra.mxu0 0.0
    %351 = vmatprep.subr.mxu0 0.0
    %352 = vmatpush1.xpose.msra.mxu0 0.0
    %353 = vmatprep.subr.mxu0 0.0
    %354 = vmatpush1.xpose.msra.mxu0 0.0
    %355 = vmatprep.subr.mxu0 0.0
    %356 = vmatpush1.xpose.msra.mxu0 0.0
    %357 = vmatprep.subr.mxu0 0.0
    %358 = vmatpush1.xpose.msra.mxu0 0.0
    %359 = vmatprep.subr.mxu0 0.0
    %360 = vmatpush1.xpose.msra.mxu0 0.0
    %361 = vmatprep.subr.mxu0 0.0
    %362 = vmatpush1.xpose.msra.mxu0 0.0
    %363 = vmatprep.subr.mxu0 0.0
    %364 = vmatpush1.xpose.msra.mxu0 0.0
    %365 = vmatprep.subr.mxu0 0.0
    %366 = vmatpush1.xpose.msra.mxu0 0.0
    %367 = vmatprep.subr.mxu0 0.0
    %368 = vmatpush1.xpose.msra.mxu0 0.0
    %369 = vmatprep.subr.mxu0 0.0
    %370 = vmatpush1.xpose.msra.mxu0 0.0
    %371 = vmatprep.subr.mxu0 0.0
    %372 = vmatpush1.xpose.msra.mxu0 0.0
    %373 = vmatprep.subr.mxu0 0.0
    %374 = vmatpush1.xpose.msra.mxu0 0.0
    %375 = vmatprep.mubr.f32.mxu0 0.0
    %376 = vmatmul.mubr.f32.gmra.mrb[0].mxu0 %v307
    %v377 = vpop.f32.mrb[0].mxu0
    %v378 = vadd.f32 0.0, %v377
    %v379 = vpop.f32.mrb[0].mxu0
    %380 = vdwg.mxu0
    %v381 = vmul.f32 %v378, 0.11785114
    %v382 = vsel %vm126, %v381, -1e+30
    %v383 = vsel %vm208, %v382, -inf
    %384 = vmax.xlane.f32.xlu0 %v383
    %v385 = vpop.xlane.xlu0 %384
    %v386 = vsub.f32 %v382, %v385
    %v387 = vmul.f32 %v386, 1.442695
    %v388 = vpow.pop %v387
    %v389 = vsel %vm208, %v388, 0.0
    %390 = vadd.xlane.f32.xlu0 %v389
    %v391 = vpop.xlane.xlu0 %390
    %v392 = vrcp.pop %v391
    %v393 = vmul.f32 %v391, %v392
    %v394 = vsub.f32 2.0, %v393
    %v395 = vmul.f32 %v392, %v394
    %v396 = vmul.f32 %v388, %v395
    %397 = vrot.lane.b32.xlu0 %v114, 94
    %v398 = vpop.permute.xlu0 %397
    %v401 = vsel %vm208, %v396, 0
    %403 = vmatprep.subr.mxu0 0.0
    %404 = vmatpush1.msra.mxu0 %v398
    %405 = vmatprep.subr.mxu0 0.0
    %406 = vmatpush1.msra.mxu0 0.0
    %407 = vmatprep.subr.mxu0 0.0
    %408 = vmatpush1.msra.mxu0 0.0
    %409 = vmatprep.subr.mxu0 0.0
    %410 = vmatpush1.msra.mxu0 0.0
    %411 = vmatprep.subr.mxu0 0.0
    %412 = vmatpush1.msra.mxu0 0.0
    %413 = vmatprep.subr.mxu0 0.0
    %414 = vmatpush1.msra.mxu0 0.0
    %415 = vmatprep.subr.mxu0 0.0
    %416 = vmatpush1.msra.mxu0 0.0
    %417 = vmatprep.subr.mxu0 0.0
    %418 = vmatpush1.msra.mxu0 0.0
    %419 = vmatprep.subr.mxu0 0.0
    %420 = vmatpush1.msra.mxu0 0.0
    %421 = vmatprep.subr.mxu0 0.0
    %422 = vmatpush1.msra.mxu0 0.0
    %423 = vmatprep.subr.mxu0 0.0
    %424 = vmatpush1.msra.mxu0 0.0
    %425 = vmatprep.subr.mxu0 0.0
    %426 = vmatpush1.msra.mxu0 0.0
    %427 = vmatprep.subr.mxu0 0.0
    %428 = vmatpush1.msra.mxu0 0.0
    %429 = vmatprep.subr.mxu0 0.0
    %430 = vmatpush1.msra.mxu0 0.0
    %431 = vmatprep.subr.mxu0 0.0
    %432 = vmatpush1.msra.mxu0 0.0
    %433 = vmatprep.subr.mxu0 0.0
    %434 = vmatpush1.msra.mxu0 0.0
    %435 = vmatprep.subr.mxu0 0.0
    %436 = vmatpush1.msra.mxu0 0.0
    %437 = vmatprep.subr.mxu0 0.0
    %438 = vmatpush1.msra.mxu0 0.0
    %439 = vmatprep.subr.mxu0 0.0
    %440 = vmatpush1.msra.mxu0 0.0
    %441 = vmatprep.subr.mxu0 0.0
    %442 = vmatpush1.msra.mxu0 0.0
    %443 = vmatprep.subr.mxu0 0.0
    %444 = vmatpush1.msra.mxu0 0.0
    %445 = vmatprep.subr.mxu0 0.0
    %446 = vmatpush1.msra.mxu0 0.0
    %447 = vmatprep.subr.mxu0 0.0
    %448 = vmatpush1.msra.mxu0 0.0
    %449 = vmatprep.subr.mxu0 0.0
    %450 = vmatpush1.msra.mxu0 0.0
    %451 = vmatprep.subr.mxu0 0.0
    %452 = vmatpush1.msra.mxu0 0.0
    %453 = vmatprep.subr.mxu0 0.0
    %454 = vmatpush1.msra.mxu0 0.0
    %455 = vmatprep.subr.mxu0 0.0
    %456 = vmatpush1.msra.mxu0 0.0
    %457 = vmatprep.subr.mxu0 0.0
    %458 = vmatpush1.msra.mxu0 0.0
    %459 = vmatprep.subr.mxu0 0.0
    %460 = vmatpush1.msra.mxu0 0.0
    %461 = vmatprep.subr.mxu0 0.0
    %462 = vmatpush1.msra.mxu0 0.0
    %463 = vmatprep.subr.mxu0 0.0
    %464 = vmatpush1.msra.mxu0 0.0
    %465 = vmatprep.subr.mxu0 0.0
    %466 = vmatpush1.msra.mxu0 0.0
    %467 = vmatprep.mubr.f32.mxu0 0.0
    %468 = vmatmul.mubr.f32.gmra.mrb[0].mxu0 %v401
    %v469 = vpop.f32.mrb[0].mxu0
    %v470 = vadd.f32 0.0, %v469
    %v471 = vpop.f32.mrb[0].mxu0
    %472 = vdwg.mxu0
    %s473 = scalar_lea.vmem %s2, 24
    %v474 = vld [vmem:[%s473] sm:$0xff]
    %v475 = vld [vmem:[%s473 + $0x8] sm:$0xff]
    %v476 = vld [vmem:[%s473 + $0x10] sm:$0x3]
    %v478 = vsel %vm131, %v470, 0
    %vm480 = vcmask 1041408
    %v482 = vsel %vm480, %v476, 0
    %484 = vmatprep.subr.mxu0 0.0
    %485 = vmatpush1.msra.mxu0 %v474
    %486 = vmatprep.subr.mxu0 0.0
    %487 = vmatpush1.msra.mxu0 %v475
    %488 = vmatprep.subr.mxu0 0.0
    %489 = vmatpush1.msra.mxu0 %v482
    %490 = vmatprep.subr.mxu0 0.0
    %491 = vmatpush1.msra.mxu0 0.0
    %492 = vmatprep.subr.mxu0 0.0
    %493 = vmatpush1.msra.mxu0 0.0
    %494 = vmatprep.subr.mxu0 0.0
    %495 = vmatpush1.msra.mxu0 0.0
    %496 = vmatprep.subr.mxu0 0.0
    %497 = vmatpush1.msra.mxu0 0.0
    %498 = vmatprep.subr.mxu0 0.0
    %499 = vmatpush1.msra.mxu0 0.0
    %500 = vmatprep.subr.mxu0 0.0
    %501 = vmatpush1.msra.mxu0 0.0
    %502 = vmatprep.subr.mxu0 0.0
    %503 = vmatpush1.msra.mxu0 0.0
    %504 = vmatprep.subr.mxu0 0.0
    %505 = vmatpush1.msra.mxu0 0.0
    %506 = vmatprep.subr.mxu0 0.0
    %507 = vmatpush1.msra.mxu0 0.0
    %508 = vmatprep.subr.mxu0 0.0
    %509 = vmatpush1.msra.mxu0 0.0
    %510 = vmatprep.subr.mxu0 0.0
    %511 = vmatpush1.msra.mxu0 0.0
    %512 = vmatprep.subr.mxu0 0.0
    %513 = vmatpush1.msra.mxu0 0.0
    %514 = vmatprep.subr.mxu0 0.0
    %515 = vmatpush1.msra.mxu0 0.0
    %516 = vmatprep.subr.mxu0 0.0
    %517 = vmatpush1.msra.mxu0 0.0
    %518 = vmatprep.subr.mxu0 0.0
    %519 = vmatpush1.msra.mxu0 0.0
    %520 = vmatprep.subr.mxu0 0.0
    %521 = vmatpush1.msra.mxu0 0.0
    %522 = vmatprep.subr.mxu0 0.0
    %523 = vmatpush1.msra.mxu0 0.0
    %524 = vmatprep.subr.mxu0 0.0
    %525 = vmatpush1.msra.mxu0 0.0
    %526 = vmatprep.subr.mxu0 0.0
    %527 = vmatpush1.msra.mxu0 0.0
    %528 = vmatprep.subr.mxu0 0.0
    %529 = vmatpush1.msra.mxu0 0.0
    %530 = vmatprep.subr.mxu0 0.0
    %531 = vmatpush1.msra.mxu0 0.0
    %532 = vmatprep.subr.mxu0 0.0
    %533 = vmatpush1.msra.mxu0 0.0
    %534 = vmatprep.subr.mxu0 0.0
    %535 = vmatpush1.msra.mxu0 0.0
    %536 = vmatprep.subr.mxu0 0.0
    %537 = vmatpush1.msra.mxu0 0.0
    %538 = vmatprep.subr.mxu0 0.0
    %539 = vmatpush1.msra.mxu0 0.0
    %540 = vmatprep.subr.mxu0 0.0
    %541 = vmatpush1.msra.mxu0 0.0
    %542 = vmatprep.subr.mxu0 0.0
    %543 = vmatpush1.msra.mxu0 0.0
    %544 = vmatprep.subr.mxu0 0.0
    %545 = vmatpush1.msra.mxu0 0.0
    %546 = vmatprep.subr.mxu0 0.0
    %547 = vmatpush1.msra.mxu0 0.0
    %548 = vmatprep.mubr.f32.mxu0 0.0
    %549 = vmatmul.mubr.f32.gmra.mrb[0].mxu0 %v478
    %v550 = vpop.f32.mrb[0].mxu0
    %v551 = vadd.f32 0.0, %v550
    %v552 = vpop.f32.mrb[0].mxu0
    %553 = vdwg.mxu0
    %v555 = vsel %vm131, %v297, 0
    %v558 = vsel %vm480, %v302, 0
    %560 = vmatprep.subr.mxu0 0.0
    %561 = vmatpush1.msra.mxu0 %v300
    %562 = vmatprep.subr.mxu0 0.0
    %563 = vmatpush1.msra.mxu0 %v301
    %564 = vmatprep.subr.mxu0 0.0
    %565 = vmatpush1.msra.mxu0 %v558
    %566 = vmatprep.subr.mxu0 0.0
    %567 = vmatpush1.msra.mxu0 0.0
    %568 = vmatprep.subr.mxu0 0.0
    %569 = vmatpush1.msra.mxu0 0.0
    %570 = vmatprep.subr.mxu0 0.0
    %571 = vmatpush1.msra.mxu0 0.0
    %572 = vmatprep.subr.mxu0 0.0
    %573 = vmatpush1.msra.mxu0 0.0
    %574 = vmatprep.subr.mxu0 0.0
    %575 = vmatpush1.msra.mxu0 0.0
    %576 = vmatprep.subr.mxu0 0.0
    %577 = vmatpush1.msra.mxu0 0.0
    %578 = vmatprep.subr.mxu0 0.0
    %579 = vmatpush1.msra.mxu0 0.0
    %580 = vmatprep.subr.mxu0 0.0
    %581 = vmatpush1.msra.mxu0 0.0
    %582 = vmatprep.subr.mxu0 0.0
    %583 = vmatpush1.msra.mxu0 0.0
    %584 = vmatprep.subr.mxu0 0.0
    %585 = vmatpush1.msra.mxu0 0.0
    %586 = vmatprep.subr.mxu0 0.0
    %587 = vmatpush1.msra.mxu0 0.0
    %588 = vmatprep.subr.mxu0 0.0
    %589 = vmatpush1.msra.mxu0 0.0
    %590 = vmatprep.subr.mxu0 0.0
    %591 = vmatpush1.msra.mxu0 0.0
    %592 = vmatprep.subr.mxu0 0.0
    %593 = vmatpush1.msra.mxu0 0.0
    %594 = vmatprep.subr.mxu0 0.0
    %595 = vmatpush1.msra.mxu0 0.0
    %596 = vmatprep.subr.mxu0 0.0
    %597 = vmatpush1.msra.mxu0 0.0
    %598 = vmatprep.subr.mxu0 0.0
    %599 = vmatpush1.msra.mxu0 0.0
    %600 = vmatprep.subr.mxu0 0.0
    %601 = vmatpush1.msra.mxu0 0.0
    %602 = vmatprep.subr.mxu0 0.0
    %603 = vmatpush1.msra.mxu0 0.0
    %604 = vmatprep.subr.mxu0 0.0
    %605 = vmatpush1.msra.mxu0 0.0
    %606 = vmatprep.subr.mxu0 0.0
    %607 = vmatpush1.msra.mxu0 0.0
    %608 = vmatprep.subr.mxu0 0.0
    %609 = vmatpush1.msra.mxu0 0.0
    %610 = vmatprep.subr.mxu0 0.0
    %611 = vmatpush1.msra.mxu0 0.0
    %612 = vmatprep.subr.mxu0 0.0
    %613 = vmatpush1.msra.mxu0 0.0
    %614 = vmatprep.subr.mxu0 0.0
    %615 = vmatpush1.msra.mxu0 0.0
    %616 = vmatprep.subr.mxu0 0.0
    %617 = vmatpush1.msra.mxu0 0.0
    %618 = vmatprep.subr.mxu0 0.0
    %619 = vmatpush1.msra.mxu0 0.0
    %620 = vmatprep.subr.mxu0 0.0
    %621 = vmatpush1.msra.mxu0 0.0
    %622 = vmatprep.subr.mxu0 0.0
    %623 = vmatpush1.msra.mxu0 0.0
    %624 = vmatprep.mubr.f32.mxu0 0.0
    %625 = vmatmul.mubr.f32.gmra.mrb[0].mxu0 %v555
    %v626 = vpop.f32.mrb[0].mxu0
    %v627 = vadd.f32 %v551, %v626
    %v628 = vpop.f32.mrb[0].mxu0
    %629 = vdwg.mxu0
    %630 = vrot.lane.b32.xlu0 %v112, 92
    %v631 = vpop.permute.xlu0 %630
    %632 = vrot.lane.b32.xlu0 %v112, 20
    %v633 = vpop.permute.xlu0 %632
    %v634 = vsel %vm131, %v631, 0
    %v636 = vsel %vm131, %v633, 0
    %638 = vmatprep.subr.mxu0 0.0
    %639 = vmatpush1.xpose.msra.mxu0 %v636
    %640 = vmatprep.subr.mxu0 0.0
    %641 = vmatpush1.xpose.msra.mxu0 0.0
    %642 = vmatprep.subr.mxu0 0.0
    %643 = vmatpush1.xpose.msra.mxu0 0.0
    %644 = vmatprep.subr.mxu0 0.0
    %645 = vmatpush1.xpose.msra.mxu0 0.0
    %646 = vmatprep.subr.mxu0 0.0
    %647 = vmatpush1.xpose.msra.mxu0 0.0
    %648 = vmatprep.subr.mxu0 0.0
    %649 = vmatpush1.xpose.msra.mxu0 0.0
    %650 = vmatprep.subr.mxu0 0.0
    %651 = vmatpush1.xpose.msra.mxu0 0.0
    %652 = vmatprep.subr.mxu0 0.0
    %653 = vmatpush1.xpose.msra.mxu0 0.0
    %654 = vmatprep.subr.mxu0 0.0
    %655 = vmatpush1.xpose.msra.mxu0 0.0
    %656 = vmatprep.subr.mxu0 0.0
    %657 = vmatpush1.xpose.msra.mxu0 0.0
    %658 = vmatprep.subr.mxu0 0.0
    %659 = vmatpush1.xpose.msra.mxu0 0.0
    %660 = vmatprep.subr.mxu0 0.0
    %661 = vmatpush1.xpose.msra.mxu0 0.0
    %662 = vmatprep.subr.mxu0 0.0
    %663 = vmatpush1.xpose.msra.mxu0 0.0
    %664 = vmatprep.subr.mxu0 0.0
    %665 = vmatpush1.xpose.msra.mxu0 0.0
    %666 = vmatprep.subr.mxu0 0.0
    %667 = vmatpush1.xpose.msra.mxu0 0.0
    %668 = vmatprep.subr.mxu0 0.0
    %669 = vmatpush1.xpose.msra.mxu0 0.0
    %670 = vmatprep.subr.mxu0 0.0
    %671 = vmatpush1.xpose.msra.mxu0 0.0
    %672 = vmatprep.subr.mxu0 0.0
    %673 = vmatpush1.xpose.msra.mxu0 0.0
    %674 = vmatprep.subr.mxu0 0.0
    %675 = vmatpush1.xpose.msra.mxu0 0.0
    %676 = vmatprep.subr.mxu0 0.0
    %677 = vmatpush1.xpose.msra.mxu0 0.0
    %678 = vmatprep.subr.mxu0 0.0
    %679 = vmatpush1.xpose.msra.mxu0 0.0
    %680 = vmatprep.subr.mxu0 0.0
    %681 = vmatpush1.xpose.msra.mxu0 0.0
    %682 = vmatprep.subr.mxu0 0.0
    %683 = vmatpush1.xpose.msra.mxu0 0.0
    %684 = vmatprep.subr.mxu0 0.0
    %685 = vmatpush1.xpose.msra.mxu0 0.0
    %686 = vmatprep.subr.mxu0 0.0
    %687 = vmatpush1.xpose.msra.mxu0 0.0
    %688 = vmatprep.subr.mxu0 0.0
    %689 = vmatpush1.xpose.msra.mxu0 0.0
    %690 = vmatprep.subr.mxu0 0.0
    %691 = vmatpush1.xpose.msra.mxu0 0.0
    %692 = vmatprep.subr.mxu0 0.0
    %693 = vmatpush1.xpose.msra.mxu0 0.0
    %694 = vmatprep.subr.mxu0 0.0
    %695 = vmatpush1.xpose.msra.mxu0 0.0
    %696 = vmatprep.subr.mxu0 0.0
    %697 = vmatpush1.xpose.msra.mxu0 0.0
    %698 = vmatprep.subr.mxu0 0.0
    %699 = vmatpush1.xpose.msra.mxu0 0.0
    %700 = vmatprep.subr.mxu0 0.0
    %701 = vmatpush1.xpose.msra.mxu0 0.0
    %702 = vmatprep.mubr.f32.mxu0 0.0
    %703 = vmatmul.mubr.f32.gmra.mrb[0].mxu0 %v634
    %v704 = vpop.f32.mrb[0].mxu0
    %v705 = vadd.f32 0.0, %v704
    %v706 = vpop.f32.mrb[0].mxu0
    %707 = vdwg.mxu0
    %v708 = vmul.f32 %v705, 0.11785114
    %v709 = vsel %vm126, %v708, -1e+30
    %v710 = vsel %vm208, %v709, -inf
    %711 = vmax.xlane.f32.xlu0 %v710
    %v712 = vpop.xlane.xlu0 %711
    %v713 = vsub.f32 %v709, %v712
    %v714 = vmul.f32 %v713, 1.442695
    %v715 = vpow.pop %v714
    %v716 = vsel %vm208, %v715, 0.0
    %717 = vadd.xlane.f32.xlu0 %v716
    %v718 = vpop.xlane.xlu0 %717
    %v719 = vrcp.pop %v718
    %v720 = vmul.f32 %v718, %v719
    %v721 = vsub.f32 2.0, %v720
    %v722 = vmul.f32 %v719, %v721
    %v723 = vmul.f32 %v715, %v722
    %724 = vrot.lane.b32.xlu0 %v114, 76
    %v725 = vpop.permute.xlu0 %724
    %v728 = vsel %vm208, %v723, 0
    %730 = vmatprep.subr.mxu0 0.0
    %731 = vmatpush1.msra.mxu0 %v725
    %732 = vmatprep.subr.mxu0 0.0
    %733 = vmatpush1.msra.mxu0 0.0
    %734 = vmatprep.subr.mxu0 0.0
    %735 = vmatpush1.msra.mxu0 0.0
    %736 = vmatprep.subr.mxu0 0.0
    %737 = vmatpush1.msra.mxu0 0.0
    %738 = vmatprep.subr.mxu0 0.0
    %739 = vmatpush1.msra.mxu0 0.0
    %740 = vmatprep.subr.mxu0 0.0
    %741 = vmatpush1.msra.mxu0 0.0
    %742 = vmatprep.subr.mxu0 0.0
    %743 = vmatpush1.msra.mxu0 0.0
    %744 = vmatprep.subr.mxu0 0.0
    %745 = vmatpush1.msra.mxu0 0.0
    %746 = vmatprep.subr.mxu0 0.0
    %747 = vmatpush1.msra.mxu0 0.0
    %748 = vmatprep.subr.mxu0 0.0
    %749 = vmatpush1.msra.mxu0 0.0
    %750 = vmatprep.subr.mxu0 0.0
    %751 = vmatpush1.msra.mxu0 0.0
    %752 = vmatprep.subr.mxu0 0.0
    %753 = vmatpush1.msra.mxu0 0.0
    %754 = vmatprep.subr.mxu0 0.0
    %755 = vmatpush1.msra.mxu0 0.0
    %756 = vmatprep.subr.mxu0 0.0
    %757 = vmatpush1.msra.mxu0 0.0
    %758 = vmatprep.subr.mxu0 0.0
    %759 = vmatpush1.msra.mxu0 0.0
    %760 = vmatprep.subr.mxu0 0.0
    %761 = vmatpush1.msra.mxu0 0.0
    %762 = vmatprep.subr.mxu0 0.0
    %763 = vmatpush1.msra.mxu0 0.0
    %764 = vmatprep.subr.mxu0 0.0
    %765 = vmatpush1.msra.mxu0 0.0
    %766 = vmatprep.subr.mxu0 0.0
    %767 = vmatpush1.msra.mxu0 0.0
    %768 = vmatprep.subr.mxu0 0.0
    %769 = vmatpush1.msra.mxu0 0.0
    %770 = vmatprep.subr.mxu0 0.0
    %771 = vmatpush1.msra.mxu0 0.0
    %772 = vmatprep.subr.mxu0 0.0
    %773 = vmatpush1.msra.mxu0 0.0
    %774 = vmatprep.subr.mxu0 0.0
    %775 = vmatpush1.msra.mxu0 0.0
    %776 = vmatprep.subr.mxu0 0.0
    %777 = vmatpush1.msra.mxu0 0.0
    %778 = vmatprep.subr.mxu0 0.0
    %779 = vmatpush1.msra.mxu0 0.0
    %780 = vmatprep.subr.mxu0 0.0
    %781 = vmatpush1.msra.mxu0 0.0
    %782 = vmatprep.subr.mxu0 0.0
    %783 = vmatpush1.msra.mxu0 0.0
    %784 = vmatprep.subr.mxu0 0.0
    %785 = vmatpush1.msra.mxu0 0.0
    %786 = vmatprep.subr.mxu0 0.0
    %787 = vmatpush1.msra.mxu0 0.0
    %788 = vmatprep.subr.mxu0 0.0
    %789 = vmatpush1.msra.mxu0 0.0
    %790 = vmatprep.subr.mxu0 0.0
    %791 = vmatpush1.msra.mxu0 0.0
    %792 = vmatprep.subr.mxu0 0.0
    %793 = vmatpush1.msra.mxu0 0.0
    %794 = vmatprep.mubr.f32.mxu0 0.0
    %795 = vmatmul.mubr.f32.gmra.mrb[0].mxu0 %v728
    %v796 = vpop.f32.mrb[0].mxu0
    %v797 = vadd.f32 0.0, %v796
    %v798 = vpop.f32.mrb[0].mxu0
    %799 = vdwg.mxu0
    %s800 = scalar_lea.vmem %s2, 48
    %v801 = vld [vmem:[%s800] sm:$0xff]
    %v802 = vld [vmem:[%s800 + $0x8] sm:$0xff]
    %v803 = vld [vmem:[%s800 + $0x10] sm:$0x3]
    %v805 = vsel %vm131, %v797, 0
    %v808 = vsel %vm480, %v803, 0
    %810 = vmatprep.subr.mxu0 0.0
    %811 = vmatpush1.msra.mxu0 %v801
    %812 = vmatprep.subr.mxu0 0.0
    %813 = vmatpush1.msra.mxu0 %v802
    %814 = vmatprep.subr.mxu0 0.0
    %815 = vmatpush1.msra.mxu0 %v808
    %816 = vmatprep.subr.mxu0 0.0
    %817 = vmatpush1.msra.mxu0 0.0
    %818 = vmatprep.subr.mxu0 0.0
    %819 = vmatpush1.msra.mxu0 0.0
    %820 = vmatprep.subr.mxu0 0.0
    %821 = vmatpush1.msra.mxu0 0.0
    %822 = vmatprep.subr.mxu0 0.0
    %823 = vmatpush1.msra.mxu0 0.0
    %824 = vmatprep.subr.mxu0 0.0
    %825 = vmatpush1.msra.mxu0 0.0
    %826 = vmatprep.subr.mxu0 0.0
    %827 = vmatpush1.msra.mxu0 0.0
    %828 = vmatprep.subr.mxu0 0.0
    %829 = vmatpush1.msra.mxu0 0.0
    %830 = vmatprep.subr.mxu0 0.0
    %831 = vmatpush1.msra.mxu0 0.0
    %832 = vmatprep.subr.mxu0 0.0
    %833 = vmatpush1.msra.mxu0 0.0
    %834 = vmatprep.subr.mxu0 0.0
    %835 = vmatpush1.msra.mxu0 0.0
    %836 = vmatprep.subr.mxu0 0.0
    %837 = vmatpush1.msra.mxu0 0.0
    %838 = vmatprep.subr.mxu0 0.0
    %839 = vmatpush1.msra.mxu0 0.0
    %840 = vmatprep.subr.mxu0 0.0
    %841 = vmatpush1.msra.mxu0 0.0
    %842 = vmatprep.subr.mxu0 0.0
    %843 = vmatpush1.msra.mxu0 0.0
    %844 = vmatprep.subr.mxu0 0.0
    %845 = vmatpush1.msra.mxu0 0.0
    %846 = vmatprep.subr.mxu0 0.0
    %847 = vmatpush1.msra.mxu0 0.0
    %848 = vmatprep.subr.mxu0 0.0
    %849 = vmatpush1.msra.mxu0 0.0
    %850 = vmatprep.subr.mxu0 0.0
    %851 = vmatpush1.msra.mxu0 0.0
    %852 = vmatprep.subr.mxu0 0.0
    %853 = vmatpush1.msra.mxu0 0.0
    %854 = vmatprep.subr.mxu0 0.0
    %855 = vmatpush1.msra.mxu0 0.0
    %856 = vmatprep.subr.mxu0 0.0
    %857 = vmatpush1.msra.mxu0 0.0
    %858 = vmatprep.subr.mxu0 0.0
    %859 = vmatpush1.msra.mxu0 0.0
    %860 = vmatprep.subr.mxu0 0.0
    %861 = vmatpush1.msra.mxu0 0.0
    %862 = vmatprep.subr.mxu0 0.0
    %863 = vmatpush1.msra.mxu0 0.0
    %864 = vmatprep.subr.mxu0 0.0
    %865 = vmatpush1.msra.mxu0 0.0
    %866 = vmatprep.subr.mxu0 0.0
    %867 = vmatpush1.msra.mxu0 0.0
    %868 = vmatprep.subr.mxu0 0.0
    %869 = vmatpush1.msra.mxu0 0.0
    %870 = vmatprep.subr.mxu0 0.0
    %871 = vmatpush1.msra.mxu0 0.0
    %872 = vmatprep.subr.mxu0 0.0
    %873 = vmatpush1.msra.mxu0 0.0
    %874 = vmatprep.mubr.f32.mxu0 0.0
    %875 = vmatmul.mubr.f32.gmra.mrb[0].mxu0 %v805
    %v876 = vpop.f32.mrb[0].mxu0
    %v877 = vadd.f32 0.0, %v876
    %v878 = vpop.f32.mrb[0].mxu0
    %879 = vdwg.mxu0
    %v880 = vadd.f32 %v627, %v877
    %881 = vrot.lane.b32.xlu0 %v112, 74
    %v882 = vpop.permute.xlu0 %881
    %883 = vrot.lane.b32.xlu0 %v112, 2
    %v884 = vpop.permute.xlu0 %883
    %885 = vrot.lane.b32.xlu0 %v114, 2
    %v886 = vpop.permute.xlu0 %885
    %vm887 = vcmask 15360
    %v888 = vsel %vm887, %v884, %v886
    %v889 = vsel %vm131, %v882, 0
    %v891 = vsel %vm131, %v888, 0
    %893 = vmatprep.subr.mxu0 0.0
    %894 = vmatpush1.xpose.msra.mxu0 %v891
    %895 = vmatprep.subr.mxu0 0.0
    %896 = vmatpush1.xpose.msra.mxu0 0.0
    %897 = vmatprep.subr.mxu0 0.0
    %898 = vmatpush1.xpose.msra.mxu0 0.0
    %899 = vmatprep.subr.mxu0 0.0
    %900 = vmatpush1.xpose.msra.mxu0 0.0
    %901 = vmatprep.subr.mxu0 0.0
    %902 = vmatpush1.xpose.msra.mxu0 0.0
    %903 = vmatprep.subr.mxu0 0.0
    %904 = vmatpush1.xpose.msra.mxu0 0.0
    %905 = vmatprep.subr.mxu0 0.0
    %906 = vmatpush1.xpose.msra.mxu0 0.0
    %907 = vmatprep.subr.mxu0 0.0
    %908 = vmatpush1.xpose.msra.mxu0 0.0
    %909 = vmatprep.subr.mxu0 0.0
    %910 = vmatpush1.xpose.msra.mxu0 0.0
    %911 = vmatprep.subr.mxu0 0.0
    %912 = vmatpush1.xpose.msra.mxu0 0.0
    %913 = vmatprep.subr.mxu0 0.0
    %914 = vmatpush1.xpose.msra.mxu0 0.0
    %915 = vmatprep.subr.mxu0 0.0
    %916 = vmatpush1.xpose.msra.mxu0 0.0
    %917 = vmatprep.subr.mxu0 0.0
    %918 = vmatpush1.xpose.msra.mxu0 0.0
    %919 = vmatprep.subr.mxu0 0.0
    %920 = vmatpush1.xpose.msra.mxu0 0.0
    %921 = vmatprep.subr.mxu0 0.0
    %922 = vmatpush1.xpose.msra.mxu0 0.0
    %923 = vmatprep.subr.mxu0 0.0
    %924 = vmatpush1.xpose.msra.mxu0 0.0
    %925 = vmatprep.subr.mxu0 0.0
    %926 = vmatpush1.xpose.msra.mxu0 0.0
    %927 = vmatprep.subr.mxu0 0.0
    %928 = vmatpush1.xpose.msra.mxu0 0.0
    %929 = vmatprep.subr.mxu0 0.0
    %930 = vmatpush1.xpose.msra.mxu0 0.0
    %931 = vmatprep.subr.mxu0 0.0
    %932 = vmatpush1.xpose.msra.mxu0 0.0
    %933 = vmatprep.subr.mxu0 0.0
    %934 = vmatpush1.xpose.msra.mxu0 0.0
    %935 = vmatprep.subr.mxu0 0.0
    %936 = vmatpush1.xpose.msra.mxu0 0.0
    %937 = vmatprep.subr.mxu0 0.0
    %938 = vmatpush1.xpose.msra.mxu0 0.0
    %939 = vmatprep.subr.mxu0 0.0
    %940 = vmatpush1.xpose.msra.mxu0 0.0
    %941 = vmatprep.subr.mxu0 0.0
    %942 = vmatpush1.xpose.msra.mxu0 0.0
    %943 = vmatprep.subr.mxu0 0.0
    %944 = vmatpush1.xpose.msra.mxu0 0.0
    %945 = vmatprep.subr.mxu0 0.0
    %946 = vmatpush1.xpose.msra.mxu0 0.0
    %947 = vmatprep.subr.mxu0 0.0
    %948 = vmatpush1.xpose.msra.mxu0 0.0
    %949 = vmatprep.subr.mxu0 0.0
    %950 = vmatpush1.xpose.msra.mxu0 0.0
    %951 = vmatprep.subr.mxu0 0.0
    %952 = vmatpush1.xpose.msra.mxu0 0.0
    %953 = vmatprep.subr.mxu0 0.0
    %954 = vmatpush1.xpose.msra.mxu0 0.0
    %955 = vmatprep.subr.mxu0 0.0
    %956 = vmatpush1.xpose.msra.mxu0 0.0
    %957 = vmatprep.mubr.f32.mxu0 0.0
    %958 = vmatmul.mubr.f32.gmra.mrb[0].mxu0 %v889
    %v959 = vpop.f32.mrb[0].mxu0
    %v960 = vadd.f32 0.0, %v959
    %v961 = vpop.f32.mrb[0].mxu0
    %962 = vdwg.mxu0
    %v963 = vmul.f32 %v960, 0.11785114
    %v964 = vsel %vm126, %v963, -1e+30
    %v965 = vsel %vm208, %v964, -inf
    %966 = vmax.xlane.f32.xlu0 %v965
    %v967 = vpop.xlane.xlu0 %966
    %v968 = vsub.f32 %v964, %v967
    %v969 = vmul.f32 %v968, 1.442695
    %v970 = vpow.pop %v969
    %v971 = vsel %vm208, %v970, 0.0
    %972 = vadd.xlane.f32.xlu0 %v971
    %v973 = vpop.xlane.xlu0 %972
    %v974 = vrcp.pop %v973
    %v975 = vmul.f32 %v973, %v974
    %v976 = vsub.f32 2.0, %v975
    %v977 = vmul.f32 %v974, %v976
    %v978 = vmul.f32 %v970, %v977
    %979 = vrot.lane.b32.xlu0 %v114, 58
    %v980 = vpop.permute.xlu0 %979
    %v983 = vsel %vm208, %v978, 0
    %985 = vmatprep.subr.mxu0 0.0
    %986 = vmatpush1.msra.mxu0 %v980
    %987 = vmatprep.subr.mxu0 0.0
    %988 = vmatpush1.msra.mxu0 0.0
    %989 = vmatprep.subr.mxu0 0.0
    %990 = vmatpush1.msra.mxu0 0.0
    %991 = vmatprep.subr.mxu0 0.0
    %992 = vmatpush1.msra.mxu0 0.0
    %993 = vmatprep.subr.mxu0 0.0
    %994 = vmatpush1.msra.mxu0 0.0
    %995 = vmatprep.subr.mxu0 0.0
    %996 = vmatpush1.msra.mxu0 0.0
    %997 = vmatprep.subr.mxu0 0.0
    %998 = vmatpush1.msra.mxu0 0.0
    %999 = vmatprep.subr.mxu0 0.0
    %1000 = vmatpush1.msra.mxu0 0.0
    %1001 = vmatprep.subr.mxu0 0.0
    %1002 = vmatpush1.msra.mxu0 0.0
    %1003 = vmatprep.subr.mxu0 0.0
    %1004 = vmatpush1.msra.mxu0 0.0
    %1005 = vmatprep.subr.mxu0 0.0
    %1006 = vmatpush1.msra.mxu0 0.0
    %1007 = vmatprep.subr.mxu0 0.0
    %1008 = vmatpush1.msra.mxu0 0.0
    %1009 = vmatprep.subr.mxu0 0.0
    %1010 = vmatpush1.msra.mxu0 0.0
    %1011 = vmatprep.subr.mxu0 0.0
    %1012 = vmatpush1.msra.mxu0 0.0
    %1013 = vmatprep.subr.mxu0 0.0
    %1014 = vmatpush1.msra.mxu0 0.0
    %1015 = vmatprep.subr.mxu0 0.0
    %1016 = vmatpush1.msra.mxu0 0.0
    %1017 = vmatprep.subr.mxu0 0.0
    %1018 = vmatpush1.msra.mxu0 0.0
    %1019 = vmatprep.subr.mxu0 0.0
    %1020 = vmatpush1.msra.mxu0 0.0
    %1021 = vmatprep.subr.mxu0 0.0
    %1022 = vmatpush1.msra.mxu0 0.0
    %1023 = vmatprep.subr.mxu0 0.0
    %1024 = vmatpush1.msra.mxu0 0.0
    %1025 = vmatprep.subr.mxu0 0.0
    %1026 = vmatpush1.msra.mxu0 0.0
    %1027 = vmatprep.subr.mxu0 0.0
    %1028 = vmatpush1.msra.mxu0 0.0
    %1029 = vmatprep.subr.mxu0 0.0
    %1030 = vmatpush1.msra.mxu0 0.0
    %1031 = vmatprep.subr.mxu0 0.0
    %1032 = vmatpush1.msra.mxu0 0.0
    %1033 = vmatprep.subr.mxu0 0.0
    %1034 = vmatpush1.msra.mxu0 0.0
    %1035 = vmatprep.subr.mxu0 0.0
    %1036 = vmatpush1.msra.mxu0 0.0
    %1037 = vmatprep.subr.mxu0 0.0
    %1038 = vmatpush1.msra.mxu0 0.0
    %1039 = vmatprep.subr.mxu0 0.0
    %1040 = vmatpush1.msra.mxu0 0.0
    %1041 = vmatprep.subr.mxu0 0.0
    %1042 = vmatpush1.msra.mxu0 0.0
    %1043 = vmatprep.subr.mxu0 0.0
    %1044 = vmatpush1.msra.mxu0 0.0
    %1045 = vmatprep.subr.mxu0 0.0
    %1046 = vmatpush1.msra.mxu0 0.0
    %1047 = vmatprep.subr.mxu0 0.0
    %1048 = vmatpush1.msra.mxu0 0.0
    %1049 = vmatprep.mubr.f32.mxu0 0.0
    %1050 = vmatmul.mubr.f32.gmra.mrb[0].mxu0 %v983
    %v1051 = vpop.f32.mrb[0].mxu0
    %v1052 = vadd.f32 0.0, %v1051
    %v1053 = vpop.f32.mrb[0].mxu0
    %1054 = vdwg.mxu0
    %s1055 = scalar_lea.vmem %s2, 72
    %v1056 = vld [vmem:[%s1055] sm:$0xff]
    %v1057 = vld [vmem:[%s1055 + $0x8] sm:$0xff]
    %v1058 = vld [vmem:[%s1055 + $0x10] sm:$0x3]
    %v1060 = vsel %vm131, %v1052, 0
    %v1063 = vsel %vm480, %v1058, 0
    %1065 = vmatprep.subr.mxu0 0.0
    %1066 = vmatpush1.msra.mxu0 %v1056
    %1067 = vmatprep.subr.mxu0 0.0
    %1068 = vmatpush1.msra.mxu0 %v1057
    %1069 = vmatprep.subr.mxu0 0.0
    %1070 = vmatpush1.msra.mxu0 %v1063
    %1071 = vmatprep.subr.mxu0 0.0
    %1072 = vmatpush1.msra.mxu0 0.0
    %1073 = vmatprep.subr.mxu0 0.0
    %1074 = vmatpush1.msra.mxu0 0.0
    %1075 = vmatprep.subr.mxu0 0.0
    %1076 = vmatpush1.msra.mxu0 0.0
    %1077 = vmatprep.subr.mxu0 0.0
    %1078 = vmatpush1.msra.mxu0 0.0
    %1079 = vmatprep.subr.mxu0 0.0
    %1080 = vmatpush1.msra.mxu0 0.0
    %1081 = vmatprep.subr.mxu0 0.0
    %1082 = vmatpush1.msra.mxu0 0.0
    %1083 = vmatprep.subr.mxu0 0.0
    %1084 = vmatpush1.msra.mxu0 0.0
    %1085 = vmatprep.subr.mxu0 0.0
    %1086 = vmatpush1.msra.mxu0 0.0
    %1087 = vmatprep.subr.mxu0 0.0
    %1088 = vmatpush1.msra.mxu0 0.0
    %1089 = vmatprep.subr.mxu0 0.0
    %1090 = vmatpush1.msra.mxu0 0.0
    %1091 = vmatprep.subr.mxu0 0.0
    %1092 = vmatpush1.msra.mxu0 0.0
    %1093 = vmatprep.subr.mxu0 0.0
    %1094 = vmatpush1.msra.mxu0 0.0
    %1095 = vmatprep.subr.mxu0 0.0
    %1096 = vmatpush1.msra.mxu0 0.0
    %1097 = vmatprep.subr.mxu0 0.0
    %1098 = vmatpush1.msra.mxu0 0.0
    %1099 = vmatprep.subr.mxu0 0.0
    %1100 = vmatpush1.msra.mxu0 0.0
    %1101 = vmatprep.subr.mxu0 0.0
    %1102 = vmatpush1.msra.mxu0 0.0
    %1103 = vmatprep.subr.mxu0 0.0
    %1104 = vmatpush1.msra.mxu0 0.0
    %1105 = vmatprep.subr.mxu0 0.0
    %1106 = vmatpush1.msra.mxu0 0.0
    %1107 = vmatprep.subr.mxu0 0.0
    %1108 = vmatpush1.msra.mxu0 0.0
    %1109 = vmatprep.subr.mxu0 0.0
    %1110 = vmatpush1.msra.mxu0 0.0
    %1111 = vmatprep.subr.mxu0 0.0
    %1112 = vmatpush1.msra.mxu0 0.0
    %1113 = vmatprep.subr.mxu0 0.0
    %1114 = vmatpush1.msra.mxu0 0.0
    %1115 = vmatprep.subr.mxu0 0.0
    %1116 = vmatpush1.msra.mxu0 0.0
    %1117 = vmatprep.subr.mxu0 0.0
    %1118 = vmatpush1.msra.mxu0 0.0
    %1119 = vmatprep.subr.mxu0 0.0
    %1120 = vmatpush1.msra.mxu0 0.0
    %1121 = vmatprep.subr.mxu0 0.0
    %1122 = vmatpush1.msra.mxu0 0.0
    %1123 = vmatprep.subr.mxu0 0.0
    %1124 = vmatpush1.msra.mxu0 0.0
    %1125 = vmatprep.subr.mxu0 0.0
    %1126 = vmatpush1.msra.mxu0 0.0
    %1127 = vmatprep.subr.mxu0 0.0
    %1128 = vmatpush1.msra.mxu0 0.0
    %1129 = vmatprep.mubr.f32.mxu0 0.0
    %1130 = vmatmul.mubr.f32.gmra.mrb[0].mxu0 %v1060
    %v1131 = vpop.f32.mrb[0].mxu0
    %v1132 = vadd.f32 0.0, %v1131
    %v1133 = vpop.f32.mrb[0].mxu0
    %1134 = vdwg.mxu0
    %v1135 = vadd.f32 %v880, %v1132
    %v1137 = vlaneseq
    %v1138 = vshrl.u32 %v1137, 7
    %v1139 = vsub.s32 0, %v1138
    %v1140 = vrot.slane %v127, %v1139
    %v1142 = vadd.f32 %v1135, %v1140
    %1143 = vst.msk [vmem:[#allocation2] sm:$0xff] %vm38, %v1142
    %1145 = vrot.lane.b32.xlu0 %v118, 56
    %v1146 = vpop.permute.xlu0 %1145
    %v1147 = vsel %vm131, %v118, 0
    %v1149 = vsel %vm131, %v1146, 0
    %1151 = vmatprep.subr.mxu0 0.0
    %1152 = vmatpush1.xpose.msra.mxu0 %v1149
    %1153 = vmatprep.subr.mxu0 0.0
    %1154 = vmatpush1.xpose.msra.mxu0 0.0
    %1155 = vmatprep.subr.mxu0 0.0
    %1156 = vmatpush1.xpose.msra.mxu0 0.0
    %1157 = vmatprep.subr.mxu0 0.0
    %1158 = vmatpush1.xpose.msra.mxu0 0.0
    %1159 = vmatprep.subr.mxu0 0.0
    %1160 = vmatpush1.xpose.msra.mxu0 0.0
    %1161 = vmatprep.subr.mxu0 0.0
    %1162 = vmatpush1.xpose.msra.mxu0 0.0
    %1163 = vmatprep.subr.mxu0 0.0
    %1164 = vmatpush1.xpose.msra.mxu0 0.0
    %1165 = vmatprep.subr.mxu0 0.0
    %1166 = vmatpush1.xpose.msra.mxu0 0.0
    %1167 = vmatprep.subr.mxu0 0.0
    %1168 = vmatpush1.xpose.msra.mxu0 0.0
    %1169 = vmatprep.subr.mxu0 0.0
    %1170 = vmatpush1.xpose.msra.mxu0 0.0
    %1171 = vmatprep.subr.mxu0 0.0
    %1172 = vmatpush1.xpose.msra.mxu0 0.0
    %1173 = vmatprep.subr.mxu0 0.0
    %1174 = vmatpush1.xpose.msra.mxu0 0.0
    %1175 = vmatprep.subr.mxu0 0.0
    %1176 = vmatpush1.xpose.msra.mxu0 0.0
    %1177 = vmatprep.subr.mxu0 0.0
    %1178 = vmatpush1.xpose.msra.mxu0 0.0
    %1179 = vmatprep.subr.mxu0 0.0
    %1180 = vmatpush1.xpose.msra.mxu0 0.0
    %1181 = vmatprep.subr.mxu0 0.0
    %1182 = vmatpush1.xpose.msra.mxu0 0.0
    %1183 = vmatprep.subr.mxu0 0.0
    %1184 = vmatpush1.xpose.msra.mxu0 0.0
    %1185 = vmatprep.subr.mxu0 0.0
    %1186 = vmatpush1.xpose.msra.mxu0 0.0
    %1187 = vmatprep.subr.mxu0 0.0
    %1188 = vmatpush1.xpose.msra.mxu0 0.0
    %1189 = vmatprep.subr.mxu0 0.0
    %1190 = vmatpush1.xpose.msra.mxu0 0.0
    %1191 = vmatprep.subr.mxu0 0.0
    %1192 = vmatpush1.xpose.msra.mxu0 0.0
    %1193 = vmatprep.subr.mxu0 0.0
    %1194 = vmatpush1.xpose.msra.mxu0 0.0
    %1195 = vmatprep.subr.mxu0 0.0
    %1196 = vmatpush1.xpose.msra.mxu0 0.0
    %1197 = vmatprep.subr.mxu0 0.0
    %1198 = vmatpush1.xpose.msra.mxu0 0.0
    %1199 = vmatprep.subr.mxu0 0.0
    %1200 = vmatpush1.xpose.msra.mxu0 0.0
    %1201 = vmatprep.subr.mxu0 0.0
    %1202 = vmatpush1.xpose.msra.mxu0 0.0
    %1203 = vmatprep.subr.mxu0 0.0
    %1204 = vmatpush1.xpose.msra.mxu0 0.0
    %1205 = vmatprep.subr.mxu0 0.0
    %1206 = vmatpush1.xpose.msra.mxu0 0.0
    %1207 = vmatprep.subr.mxu0 0.0
    %1208 = vmatpush1.xpose.msra.mxu0 0.0
    %1209 = vmatprep.subr.mxu0 0.0
    %1210 = vmatpush1.xpose.msra.mxu0 0.0
    %1211 = vmatprep.subr.mxu0 0.0
    %1212 = vmatpush1.xpose.msra.mxu0 0.0
    %1213 = vmatprep.subr.mxu0 0.0
    %1214 = vmatpush1.xpose.msra.mxu0 0.0
    %1215 = vmatprep.mubr.f32.mxu0 0.0
    %1216 = vmatmul.mubr.f32.gmra.mrb[0].mxu0 %v1147
    %v1217 = vpop.f32.mrb[0].mxu0
    %v1218 = vadd.f32 0.0, %v1217
    %v1219 = vpop.f32.mrb[0].mxu0
    %1220 = vdwg.mxu0
    %v1221 = vmul.f32 %v1218, 0.11785114
    %v1222 = vsel %vm126, %v1221, -1e+30
    %v1223 = vsel %vm208, %v1222, -inf
    %1224 = vmax.xlane.f32.xlu0 %v1223
    %v1225 = vpop.xlane.xlu0 %1224
    %v1226 = vsub.f32 %v1222, %v1225
    %v1227 = vmul.f32 %v1226, 1.442695
    %v1228 = vpow.pop %v1227
    %v1229 = vsel %vm208, %v1228, 0.0
    %1230 = vadd.xlane.f32.xlu0 %v1229
    %v1231 = vpop.xlane.xlu0 %1230
    %v1232 = vrcp.pop %v1231
    %v1233 = vmul.f32 %v1231, %v1232
    %v1234 = vsub.f32 2.0, %v1233
    %v1235 = vmul.f32 %v1232, %v1234
    %v1236 = vmul.f32 %v1228, %v1235
    %1238 = vrot.lane.b32.xlu0 %v120, 112
    %v1239 = vpop.permute.xlu0 %1238
    %v1242 = vsel %vm208, %v1236, 0
    %1244 = vmatprep.subr.mxu0 0.0
    %1245 = vmatpush1.msra.mxu0 %v1239
    %1246 = vmatprep.subr.mxu0 0.0
    %1247 = vmatpush1.msra.mxu0 0.0
    %1248 = vmatprep.subr.mxu0 0.0
    %1249 = vmatpush1.msra.mxu0 0.0
    %1250 = vmatprep.subr.mxu0 0.0
    %1251 = vmatpush1.msra.mxu0 0.0
    %1252 = vmatprep.subr.mxu0 0.0
    %1253 = vmatpush1.msra.mxu0 0.0
    %1254 = vmatprep.subr.mxu0 0.0
    %1255 = vmatpush1.msra.mxu0 0.0
    %1256 = vmatprep.subr.mxu0 0.0
    %1257 = vmatpush1.msra.mxu0 0.0
    %1258 = vmatprep.subr.mxu0 0.0
    %1259 = vmatpush1.msra.mxu0 0.0
    %1260 = vmatprep.subr.mxu0 0.0
    %1261 = vmatpush1.msra.mxu0 0.0
    %1262 = vmatprep.subr.mxu0 0.0
    %1263 = vmatpush1.msra.mxu0 0.0
    %1264 = vmatprep.subr.mxu0 0.0
    %1265 = vmatpush1.msra.mxu0 0.0
    %1266 = vmatprep.subr.mxu0 0.0
    %1267 = vmatpush1.msra.mxu0 0.0
    %1268 = vmatprep.subr.mxu0 0.0
    %1269 = vmatpush1.msra.mxu0 0.0
    %1270 = vmatprep.subr.mxu0 0.0
    %1271 = vmatpush1.msra.mxu0 0.0
    %1272 = vmatprep.subr.mxu0 0.0
    %1273 = vmatpush1.msra.mxu0 0.0
    %1274 = vmatprep.subr.mxu0 0.0
    %1275 = vmatpush1.msra.mxu0 0.0
    %1276 = vmatprep.subr.mxu0 0.0
    %1277 = vmatpush1.msra.mxu0 0.0
    %1278 = vmatprep.subr.mxu0 0.0
    %1279 = vmatpush1.msra.mxu0 0.0
    %1280 = vmatprep.subr.mxu0 0.0
    %1281 = vmatpush1.msra.mxu0 0.0
    %1282 = vmatprep.subr.mxu0 0.0
    %1283 = vmatpush1.msra.mxu0 0.0
    %1284 = vmatprep.subr.mxu0 0.0
    %1285 = vmatpush1.msra.mxu0 0.0
    %1286 = vmatprep.subr.mxu0 0.0
    %1287 = vmatpush1.msra.mxu0 0.0
    %1288 = vmatprep.subr.mxu0 0.0
    %1289 = vmatpush1.msra.mxu0 0.0
    %1290 = vmatprep.subr.mxu0 0.0
    %1291 = vmatpush1.msra.mxu0 0.0
    %1292 = vmatprep.subr.mxu0 0.0
    %1293 = vmatpush1.msra.mxu0 0.0
    %1294 = vmatprep.subr.mxu0 0.0
    %1295 = vmatpush1.msra.mxu0 0.0
    %1296 = vmatprep.subr.mxu0 0.0
    %1297 = vmatpush1.msra.mxu0 0.0
    %1298 = vmatprep.subr.mxu0 0.0
    %1299 = vmatpush1.msra.mxu0 0.0
    %1300 = vmatprep.subr.mxu0 0.0
    %1301 = vmatpush1.msra.mxu0 0.0
    %1302 = vmatprep.subr.mxu0 0.0
    %1303 = vmatpush1.msra.mxu0 0.0
    %1304 = vmatprep.subr.mxu0 0.0
    %1305 = vmatpush1.msra.mxu0 0.0
    %1306 = vmatprep.subr.mxu0 0.0
    %1307 = vmatpush1.msra.mxu0 0.0
    %1308 = vmatprep.mubr.f32.mxu0 0.0
    %1309 = vmatmul.mubr.f32.gmra.mrb[0].mxu0 %v1242
    %v1310 = vpop.f32.mrb[0].mxu0
    %v1311 = vadd.f32 0.0, %v1310
    %v1312 = vpop.f32.mrb[0].mxu0
    %1313 = vdwg.mxu0
    %v1314 = vld [vmem:[%s2] sm:$0xff]
    %v1315 = vld [vmem:[%s2 + $0x8] sm:$0xff]
    %v1316 = vld [vmem:[%s2 + $0x10] sm:$0x3]
    %1317 = vrot.lane.b32.xlu0 %v118, 110
    %v1318 = vpop.permute.xlu0 %1317
    %1319 = vrot.lane.b32.xlu0 %v118, 38
    %v1320 = vpop.permute.xlu0 %1319
    %v1321 = vsel %vm131, %v1318, 0
    %v1323 = vsel %vm131, %v1320, 0
    %1325 = vmatprep.subr.mxu0 0.0
    %1326 = vmatpush1.xpose.msra.mxu0 %v1323
    %1327 = vmatprep.subr.mxu0 0.0
    %1328 = vmatpush1.xpose.msra.mxu0 0.0
    %1329 = vmatprep.subr.mxu0 0.0
    %1330 = vmatpush1.xpose.msra.mxu0 0.0
    %1331 = vmatprep.subr.mxu0 0.0
    %1332 = vmatpush1.xpose.msra.mxu0 0.0
    %1333 = vmatprep.subr.mxu0 0.0
    %1334 = vmatpush1.xpose.msra.mxu0 0.0
    %1335 = vmatprep.subr.mxu0 0.0
    %1336 = vmatpush1.xpose.msra.mxu0 0.0
    %1337 = vmatprep.subr.mxu0 0.0
    %1338 = vmatpush1.xpose.msra.mxu0 0.0
    %1339 = vmatprep.subr.mxu0 0.0
    %1340 = vmatpush1.xpose.msra.mxu0 0.0
    %1341 = vmatprep.subr.mxu0 0.0
    %1342 = vmatpush1.xpose.msra.mxu0 0.0
    %1343 = vmatprep.subr.mxu0 0.0
    %1344 = vmatpush1.xpose.msra.mxu0 0.0
    %1345 = vmatprep.subr.mxu0 0.0
    %1346 = vmatpush1.xpose.msra.mxu0 0.0
    %1347 = vmatprep.subr.mxu0 0.0
    %1348 = vmatpush1.xpose.msra.mxu0 0.0
    %1349 = vmatprep.subr.mxu0 0.0
    %1350 = vmatpush1.xpose.msra.mxu0 0.0
    %1351 = vmatprep.subr.mxu0 0.0
    %1352 = vmatpush1.xpose.msra.mxu0 0.0
    %1353 = vmatprep.subr.mxu0 0.0
    %1354 = vmatpush1.xpose.msra.mxu0 0.0
    %1355 = vmatprep.subr.mxu0 0.0
    %1356 = vmatpush1.xpose.msra.mxu0 0.0
    %1357 = vmatprep.subr.mxu0 0.0
    %1358 = vmatpush1.xpose.msra.mxu0 0.0
    %1359 = vmatprep.subr.mxu0 0.0
    %1360 = vmatpush1.xpose.msra.mxu0 0.0
    %1361 = vmatprep.subr.mxu0 0.0
    %1362 = vmatpush1.xpose.msra.mxu0 0.0
    %1363 = vmatprep.subr.mxu0 0.0
    %1364 = vmatpush1.xpose.msra.mxu0 0.0
    %1365 = vmatprep.subr.mxu0 0.0
    %1366 = vmatpush1.xpose.msra.mxu0 0.0
    %1367 = vmatprep.subr.mxu0 0.0
    %1368 = vmatpush1.xpose.msra.mxu0 0.0
    %1369 = vmatprep.subr.mxu0 0.0
    %1370 = vmatpush1.xpose.msra.mxu0 0.0
    %1371 = vmatprep.subr.mxu0 0.0
    %1372 = vmatpush1.xpose.msra.mxu0 0.0
    %1373 = vmatprep.subr.mxu0 0.0
    %1374 = vmatpush1.xpose.msra.mxu0 0.0
    %1375 = vmatprep.subr.mxu0 0.0
    %1376 = vmatpush1.xpose.msra.mxu0 0.0
    %1377 = vmatprep.subr.mxu0 0.0
    %1378 = vmatpush1.xpose.msra.mxu0 0.0
    %1379 = vmatprep.subr.mxu0 0.0
    %1380 = vmatpush1.xpose.msra.mxu0 0.0
    %1381 = vmatprep.subr.mxu0 0.0
    %1382 = vmatpush1.xpose.msra.mxu0 0.0
    %1383 = vmatprep.subr.mxu0 0.0
    %1384 = vmatpush1.xpose.msra.mxu0 0.0
    %1385 = vmatprep.subr.mxu0 0.0
    %1386 = vmatpush1.xpose.msra.mxu0 0.0
    %1387 = vmatprep.subr.mxu0 0.0
    %1388 = vmatpush1.xpose.msra.mxu0 0.0
    %1389 = vmatprep.mubr.f32.mxu0 0.0
    %1390 = vmatmul.mubr.f32.gmra.mrb[0].mxu0 %v1321
    %v1391 = vpop.f32.mrb[0].mxu0
    %v1392 = vadd.f32 0.0, %v1391
    %v1393 = vpop.f32.mrb[0].mxu0
    %1394 = vdwg.mxu0
    %v1395 = vmul.f32 %v1392, 0.11785114
    %v1396 = vsel %vm126, %v1395, -1e+30
    %v1397 = vsel %vm208, %v1396, -inf
    %1398 = vmax.xlane.f32.xlu0 %v1397
    %v1399 = vpop.xlane.xlu0 %1398
    %v1400 = vsub.f32 %v1396, %v1399
    %v1401 = vmul.f32 %v1400, 1.442695
    %v1402 = vpow.pop %v1401
    %v1403 = vsel %vm208, %v1402, 0.0
    %1404 = vadd.xlane.f32.xlu0 %v1403
    %v1405 = vpop.xlane.xlu0 %1404
    %v1406 = vrcp.pop %v1405
    %v1407 = vmul.f32 %v1405, %v1406
    %v1408 = vsub.f32 2.0, %v1407
    %v1409 = vmul.f32 %v1406, %v1408
    %v1410 = vmul.f32 %v1402, %v1409
    %1411 = vrot.lane.b32.xlu0 %v120, 94
    %v1412 = vpop.permute.xlu0 %1411
    %v1415 = vsel %vm208, %v1410, 0
    %1417 = vmatprep.subr.mxu0 0.0
    %1418 = vmatpush1.msra.mxu0 %v1412
    %1419 = vmatprep.subr.mxu0 0.0
    %1420 = vmatpush1.msra.mxu0 0.0
    %1421 = vmatprep.subr.mxu0 0.0
    %1422 = vmatpush1.msra.mxu0 0.0
    %1423 = vmatprep.subr.mxu0 0.0
    %1424 = vmatpush1.msra.mxu0 0.0
    %1425 = vmatprep.subr.mxu0 0.0
    %1426 = vmatpush1.msra.mxu0 0.0
    %1427 = vmatprep.subr.mxu0 0.0
    %1428 = vmatpush1.msra.mxu0 0.0
    %1429 = vmatprep.subr.mxu0 0.0
    %1430 = vmatpush1.msra.mxu0 0.0
    %1431 = vmatprep.subr.mxu0 0.0
    %1432 = vmatpush1.msra.mxu0 0.0
    %1433 = vmatprep.subr.mxu0 0.0
    %1434 = vmatpush1.msra.mxu0 0.0
    %1435 = vmatprep.subr.mxu0 0.0
    %1436 = vmatpush1.msra.mxu0 0.0
    %1437 = vmatprep.subr.mxu0 0.0
    %1438 = vmatpush1.msra.mxu0 0.0
    %1439 = vmatprep.subr.mxu0 0.0
    %1440 = vmatpush1.msra.mxu0 0.0
    %1441 = vmatprep.subr.mxu0 0.0
    %1442 = vmatpush1.msra.mxu0 0.0
    %1443 = vmatprep.subr.mxu0 0.0
    %1444 = vmatpush1.msra.mxu0 0.0
    %1445 = vmatprep.subr.mxu0 0.0
    %1446 = vmatpush1.msra.mxu0 0.0
    %1447 = vmatprep.subr.mxu0 0.0
    %1448 = vmatpush1.msra.mxu0 0.0
    %1449 = vmatprep.subr.mxu0 0.0
    %1450 = vmatpush1.msra.mxu0 0.0
    %1451 = vmatprep.subr.mxu0 0.0
    %1452 = vmatpush1.msra.mxu0 0.0
    %1453 = vmatprep.subr.mxu0 0.0
    %1454 = vmatpush1.msra.mxu0 0.0
    %1455 = vmatprep.subr.mxu0 0.0
    %1456 = vmatpush1.msra.mxu0 0.0
    %1457 = vmatprep.subr.mxu0 0.0
    %1458 = vmatpush1.msra.mxu0 0.0
    %1459 = vmatprep.subr.mxu0 0.0
    %1460 = vmatpush1.msra.mxu0 0.0
    %1461 = vmatprep.subr.mxu0 0.0
    %1462 = vmatpush1.msra.mxu0 0.0
    %1463 = vmatprep.subr.mxu0 0.0
    %1464 = vmatpush1.msra.mxu0 0.0
    %1465 = vmatprep.subr.mxu0 0.0
    %1466 = vmatpush1.msra.mxu0 0.0
    %1467 = vmatprep.subr.mxu0 0.0
    %1468 = vmatpush1.msra.mxu0 0.0
    %1469 = vmatprep.subr.mxu0 0.0
    %1470 = vmatpush1.msra.mxu0 0.0
    %1471 = vmatprep.subr.mxu0 0.0
    %1472 = vmatpush1.msra.mxu0 0.0
    %1473 = vmatprep.subr.mxu0 0.0
    %1474 = vmatpush1.msra.mxu0 0.0
    %1475 = vmatprep.subr.mxu0 0.0
    %1476 = vmatpush1.msra.mxu0 0.0
    %1477 = vmatprep.subr.mxu0 0.0
    %1478 = vmatpush1.msra.mxu0 0.0
    %1479 = vmatprep.subr.mxu0 0.0
    %1480 = vmatpush1.msra.mxu0 0.0
    %1481 = vmatprep.mubr.f32.mxu0 0.0
    %1482 = vmatmul.mubr.f32.gmra.mrb[0].mxu0 %v1415
    %v1483 = vpop.f32.mrb[0].mxu0
    %v1484 = vadd.f32 0.0, %v1483
    %v1485 = vpop.f32.mrb[0].mxu0
    %1486 = vdwg.mxu0
    %v1487 = vld [vmem:[%s473] sm:$0xff]
    %v1488 = vld [vmem:[%s473 + $0x8] sm:$0xff]
    %v1489 = vld [vmem:[%s473 + $0x10] sm:$0x3]
    %v1491 = vsel %vm131, %v1484, 0
    %v1494 = vsel %vm480, %v1489, 0
    %1496 = vmatprep.subr.mxu0 0.0
    %1497 = vmatpush1.msra.mxu0 %v1487
    %1498 = vmatprep.subr.mxu0 0.0
    %1499 = vmatpush1.msra.mxu0 %v1488
    %1500 = vmatprep.subr.mxu0 0.0
    %1501 = vmatpush1.msra.mxu0 %v1494
    %1502 = vmatprep.subr.mxu0 0.0
    %1503 = vmatpush1.msra.mxu0 0.0
    %1504 = vmatprep.subr.mxu0 0.0
    %1505 = vmatpush1.msra.mxu0 0.0
    %1506 = vmatprep.subr.mxu0 0.0
    %1507 = vmatpush1.msra.mxu0 0.0
    %1508 = vmatprep.subr.mxu0 0.0
    %1509 = vmatpush1.msra.mxu0 0.0
    %1510 = vmatprep.subr.mxu0 0.0
    %1511 = vmatpush1.msra.mxu0 0.0
    %1512 = vmatprep.subr.mxu0 0.0
    %1513 = vmatpush1.msra.mxu0 0.0
    %1514 = vmatprep.subr.mxu0 0.0
    %1515 = vmatpush1.msra.mxu0 0.0
    %1516 = vmatprep.subr.mxu0 0.0
    %1517 = vmatpush1.msra.mxu0 0.0
    %1518 = vmatprep.subr.mxu0 0.0
    %1519 = vmatpush1.msra.mxu0 0.0
    %1520 = vmatprep.subr.mxu0 0.0
    %1521 = vmatpush1.msra.mxu0 0.0
    %1522 = vmatprep.subr.mxu0 0.0
    %1523 = vmatpush1.msra.mxu0 0.0
    %1524 = vmatprep.subr.mxu0 0.0
    %1525 = vmatpush1.msra.mxu0 0.0
    %1526 = vmatprep.subr.mxu0 0.0
    %1527 = vmatpush1.msra.mxu0 0.0
    %1528 = vmatprep.subr.mxu0 0.0
    %1529 = vmatpush1.msra.mxu0 0.0
    %1530 = vmatprep.subr.mxu0 0.0
    %1531 = vmatpush1.msra.mxu0 0.0
    %1532 = vmatprep.subr.mxu0 0.0
    %1533 = vmatpush1.msra.mxu0 0.0
    %1534 = vmatprep.subr.mxu0 0.0
    %1535 = vmatpush1.msra.mxu0 0.0
    %1536 = vmatprep.subr.mxu0 0.0
    %1537 = vmatpush1.msra.mxu0 0.0
    %1538 = vmatprep.subr.mxu0 0.0
    %1539 = vmatpush1.msra.mxu0 0.0
    %1540 = vmatprep.subr.mxu0 0.0
    %1541 = vmatpush1.msra.mxu0 0.0
    %1542 = vmatprep.subr.mxu0 0.0
    %1543 = vmatpush1.msra.mxu0 0.0
    %1544 = vmatprep.subr.mxu0 0.0
    %1545 = vmatpush1.msra.mxu0 0.0
    %1546 = vmatprep.subr.mxu0 0.0
    %1547 = vmatpush1.msra.mxu0 0.0
    %1548 = vmatprep.subr.mxu0 0.0
    %1549 = vmatpush1.msra.mxu0 0.0
    %1550 = vmatprep.subr.mxu0 0.0
    %1551 = vmatpush1.msra.mxu0 0.0
    %1552 = vmatprep.subr.mxu0 0.0
    %1553 = vmatpush1.msra.mxu0 0.0
    %1554 = vmatprep.subr.mxu0 0.0
    %1555 = vmatpush1.msra.mxu0 0.0
    %1556 = vmatprep.subr.mxu0 0.0
    %1557 = vmatpush1.msra.mxu0 0.0
    %1558 = vmatprep.subr.mxu0 0.0
    %1559 = vmatpush1.msra.mxu0 0.0
    %1560 = vmatprep.mubr.f32.mxu0 0.0
    %1561 = vmatmul.mubr.f32.gmra.mrb[0].mxu0 %v1491
    %v1562 = vpop.f32.mrb[0].mxu0
    %v1563 = vadd.f32 0.0, %v1562
    %v1564 = vpop.f32.mrb[0].mxu0
    %1565 = vdwg.mxu0
    %v1567 = vsel %vm131, %v1311, 0
    %v1570 = vsel %vm480, %v1316, 0
    %1572 = vmatprep.subr.mxu0 0.0
    %1573 = vmatpush1.msra.mxu0 %v1314
    %1574 = vmatprep.subr.mxu0 0.0
    %1575 = vmatpush1.msra.mxu0 %v1315
    %1576 = vmatprep.subr.mxu0 0.0
    %1577 = vmatpush1.msra.mxu0 %v1570
    %1578 = vmatprep.subr.mxu0 0.0
    %1579 = vmatpush1.msra.mxu0 0.0
    %1580 = vmatprep.subr.mxu0 0.0
    %1581 = vmatpush1.msra.mxu0 0.0
    %1582 = vmatprep.subr.mxu0 0.0
    %1583 = vmatpush1.msra.mxu0 0.0
    %1584 = vmatprep.subr.mxu0 0.0
    %1585 = vmatpush1.msra.mxu0 0.0
    %1586 = vmatprep.subr.mxu0 0.0
    %1587 = vmatpush1.msra.mxu0 0.0
    %1588 = vmatprep.subr.mxu0 0.0
    %1589 = vmatpush1.msra.mxu0 0.0
    %1590 = vmatprep.subr.mxu0 0.0
    %1591 = vmatpush1.msra.mxu0 0.0
    %1592 = vmatprep.subr.mxu0 0.0
    %1593 = vmatpush1.msra.mxu0 0.0
    %1594 = vmatprep.subr.mxu0 0.0
    %1595 = vmatpush1.msra.mxu0 0.0
    %1596 = vmatprep.subr.mxu0 0.0
    %1597 = vmatpush1.msra.mxu0 0.0
    %1598 = vmatprep.subr.mxu0 0.0
    %1599 = vmatpush1.msra.mxu0 0.0
    %1600 = vmatprep.subr.mxu0 0.0
    %1601 = vmatpush1.msra.mxu0 0.0
    %1602 = vmatprep.subr.mxu0 0.0
    %1603 = vmatpush1.msra.mxu0 0.0
    %1604 = vmatprep.subr.mxu0 0.0
    %1605 = vmatpush1.msra.mxu0 0.0
    %1606 = vmatprep.subr.mxu0 0.0
    %1607 = vmatpush1.msra.mxu0 0.0
    %1608 = vmatprep.subr.mxu0 0.0
    %1609 = vmatpush1.msra.mxu0 0.0
    %1610 = vmatprep.subr.mxu0 0.0
    %1611 = vmatpush1.msra.mxu0 0.0
    %1612 = vmatprep.subr.mxu0 0.0
    %1613 = vmatpush1.msra.mxu0 0.0
    %1614 = vmatprep.subr.mxu0 0.0
    %1615 = vmatpush1.msra.mxu0 0.0
    %1616 = vmatprep.subr.mxu0 0.0
    %1617 = vmatpush1.msra.mxu0 0.0
    %1618 = vmatprep.subr.mxu0 0.0
    %1619 = vmatpush1.msra.mxu0 0.0
    %1620 = vmatprep.subr.mxu0 0.0
    %1621 = vmatpush1.msra.mxu0 0.0
    %1622 = vmatprep.subr.mxu0 0.0
    %1623 = vmatpush1.msra.mxu0 0.0
    %1624 = vmatprep.subr.mxu0 0.0
    %1625 = vmatpush1.msra.mxu0 0.0
    %1626 = vmatprep.subr.mxu0 0.0
    %1627 = vmatpush1.msra.mxu0 0.0
    %1628 = vmatprep.subr.mxu0 0.0
    %1629 = vmatpush1.msra.mxu0 0.0
    %1630 = vmatprep.subr.mxu0 0.0
    %1631 = vmatpush1.msra.mxu0 0.0
    %1632 = vmatprep.subr.mxu0 0.0
    %1633 = vmatpush1.msra.mxu0 0.0
    %1634 = vmatprep.subr.mxu0 0.0
    %1635 = vmatpush1.msra.mxu0 0.0
    %1636 = vmatprep.mubr.f32.mxu0 0.0
    %1637 = vmatmul.mubr.f32.gmra.mrb[0].mxu0 %v1567
    %v1638 = vpop.f32.mrb[0].mxu0
    %v1639 = vadd.f32 %v1563, %v1638
    %v1640 = vpop.f32.mrb[0].mxu0
    %1641 = vdwg.mxu0
    %1642 = vrot.lane.b32.xlu0 %v118, 92
    %v1643 = vpop.permute.xlu0 %1642
    %1644 = vrot.lane.b32.xlu0 %v118, 20
    %v1645 = vpop.permute.xlu0 %1644
    %v1646 = vsel %vm131, %v1643, 0
    %v1648 = vsel %vm131, %v1645, 0
    %1650 = vmatprep.subr.mxu0 0.0
    %1651 = vmatpush1.xpose.msra.mxu0 %v1648
    %1652 = vmatprep.subr.mxu0 0.0
    %1653 = vmatpush1.xpose.msra.mxu0 0.0
    %1654 = vmatprep.subr.mxu0 0.0
    %1655 = vmatpush1.xpose.msra.mxu0 0.0
    %1656 = vmatprep.subr.mxu0 0.0
    %1657 = vmatpush1.xpose.msra.mxu0 0.0
    %1658 = vmatprep.subr.mxu0 0.0
    %1659 = vmatpush1.xpose.msra.mxu0 0.0
    %1660 = vmatprep.subr.mxu0 0.0
    %1661 = vmatpush1.xpose.msra.mxu0 0.0
    %1662 = vmatprep.subr.mxu0 0.0
    %1663 = vmatpush1.xpose.msra.mxu0 0.0
    %1664 = vmatprep.subr.mxu0 0.0
    %1665 = vmatpush1.xpose.msra.mxu0 0.0
    %1666 = vmatprep.subr.mxu0 0.0
    %1667 = vmatpush1.xpose.msra.mxu0 0.0
    %1668 = vmatprep.subr.mxu0 0.0
    %1669 = vmatpush1.xpose.msra.mxu0 0.0
    %1670 = vmatprep.subr.mxu0 0.0
    %1671 = vmatpush1.xpose.msra.mxu0 0.0
    %1672 = vmatprep.subr.mxu0 0.0
    %1673 = vmatpush1.xpose.msra.mxu0 0.0
    %1674 = vmatprep.subr.mxu0 0.0
    %1675 = vmatpush1.xpose.msra.mxu0 0.0
    %1676 = vmatprep.subr.mxu0 0.0
    %1677 = vmatpush1.xpose.msra.mxu0 0.0
    %1678 = vmatprep.subr.mxu0 0.0
    %1679 = vmatpush1.xpose.msra.mxu0 0.0
    %1680 = vmatprep.subr.mxu0 0.0
    %1681 = vmatpush1.xpose.msra.mxu0 0.0
    %1682 = vmatprep.subr.mxu0 0.0
    %1683 = vmatpush1.xpose.msra.mxu0 0.0
    %1684 = vmatprep.subr.mxu0 0.0
    %1685 = vmatpush1.xpose.msra.mxu0 0.0
    %1686 = vmatprep.subr.mxu0 0.0
    %1687 = vmatpush1.xpose.msra.mxu0 0.0
    %1688 = vmatprep.subr.mxu0 0.0
    %1689 = vmatpush1.xpose.msra.mxu0 0.0
    %1690 = vmatprep.subr.mxu0 0.0
    %1691 = vmatpush1.xpose.msra.mxu0 0.0
    %1692 = vmatprep.subr.mxu0 0.0
    %1693 = vmatpush1.xpose.msra.mxu0 0.0
    %1694 = vmatprep.subr.mxu0 0.0
    %1695 = vmatpush1.xpose.msra.mxu0 0.0
    %1696 = vmatprep.subr.mxu0 0.0
    %1697 = vmatpush1.xpose.msra.mxu0 0.0
    %1698 = vmatprep.subr.mxu0 0.0
    %1699 = vmatpush1.xpose.msra.mxu0 0.0
    %1700 = vmatprep.subr.mxu0 0.0
    %1701 = vmatpush1.xpose.msra.mxu0 0.0
    %1702 = vmatprep.subr.mxu0 0.0
    %1703 = vmatpush1.xpose.msra.mxu0 0.0
    %1704 = vmatprep.subr.mxu0 0.0
    %1705 = vmatpush1.xpose.msra.mxu0 0.0
    %1706 = vmatprep.subr.mxu0 0.0
    %1707 = vmatpush1.xpose.msra.mxu0 0.0
    %1708 = vmatprep.subr.mxu0 0.0
    %1709 = vmatpush1.xpose.msra.mxu0 0.0
    %1710 = vmatprep.subr.mxu0 0.0
    %1711 = vmatpush1.xpose.msra.mxu0 0.0
    %1712 = vmatprep.subr.mxu0 0.0
    %1713 = vmatpush1.xpose.msra.mxu0 0.0
    %1714 = vmatprep.mubr.f32.mxu0 0.0
    %1715 = vmatmul.mubr.f32.gmra.mrb[0].mxu0 %v1646
    %v1716 = vpop.f32.mrb[0].mxu0
    %v1717 = vadd.f32 0.0, %v1716
    %v1718 = vpop.f32.mrb[0].mxu0
    %1719 = vdwg.mxu0
    %v1720 = vmul.f32 %v1717, 0.11785114
    %v1721 = vsel %vm126, %v1720, -1e+30
    %v1722 = vsel %vm208, %v1721, -inf
    %1723 = vmax.xlane.f32.xlu0 %v1722
    %v1724 = vpop.xlane.xlu0 %1723
    %v1725 = vsub.f32 %v1721, %v1724
    %v1726 = vmul.f32 %v1725, 1.442695
    %v1727 = vpow.pop %v1726
    %v1728 = vsel %vm208, %v1727, 0.0
    %1729 = vadd.xlane.f32.xlu0 %v1728
    %v1730 = vpop.xlane.xlu0 %1729
    %v1731 = vrcp.pop %v1730
    %v1732 = vmul.f32 %v1730, %v1731
    %v1733 = vsub.f32 2.0, %v1732
    %v1734 = vmul.f32 %v1731, %v1733
    %v1735 = vmul.f32 %v1727, %v1734
    %1736 = vrot.lane.b32.xlu0 %v120, 76
    %v1737 = vpop.permute.xlu0 %1736
    %v1740 = vsel %vm208, %v1735, 0
    %1742 = vmatprep.subr.mxu0 0.0
    %1743 = vmatpush1.msra.mxu0 %v1737
    %1744 = vmatprep.subr.mxu0 0.0
    %1745 = vmatpush1.msra.mxu0 0.0
    %1746 = vmatprep.subr.mxu0 0.0
    %1747 = vmatpush1.msra.mxu0 0.0
    %1748 = vmatprep.subr.mxu0 0.0
    %1749 = vmatpush1.msra.mxu0 0.0
    %1750 = vmatprep.subr.mxu0 0.0
    %1751 = vmatpush1.msra.mxu0 0.0
    %1752 = vmatprep.subr.mxu0 0.0
    %1753 = vmatpush1.msra.mxu0 0.0
    %1754 = vmatprep.subr.mxu0 0.0
    %1755 = vmatpush1.msra.mxu0 0.0
    %1756 = vmatprep.subr.mxu0 0.0
    %1757 = vmatpush1.msra.mxu0 0.0
    %1758 = vmatprep.subr.mxu0 0.0
    %1759 = vmatpush1.msra.mxu0 0.0
    %1760 = vmatprep.subr.mxu0 0.0
    %1761 = vmatpush1.msra.mxu0 0.0
    %1762 = vmatprep.subr.mxu0 0.0
    %1763 = vmatpush1.msra.mxu0 0.0
    %1764 = vmatprep.subr.mxu0 0.0
    %1765 = vmatpush1.msra.mxu0 0.0
    %1766 = vmatprep.subr.mxu0 0.0
    %1767 = vmatpush1.msra.mxu0 0.0
    %1768 = vmatprep.subr.mxu0 0.0
    %1769 = vmatpush1.msra.mxu0 0.0
    %1770 = vmatprep.subr.mxu0 0.0
    %1771 = vmatpush1.msra.mxu0 0.0
    %1772 = vmatprep.subr.mxu0 0.0
    %1773 = vmatpush1.msra.mxu0 0.0
    %1774 = vmatprep.subr.mxu0 0.0
    %1775 = vmatpush1.msra.mxu0 0.0
    %1776 = vmatprep.subr.mxu0 0.0
    %1777 = vmatpush1.msra.mxu0 0.0
    %1778 = vmatprep.subr.mxu0 0.0
    %1779 = vmatpush1.msra.mxu0 0.0
    %1780 = vmatprep.subr.mxu0 0.0
    %1781 = vmatpush1.msra.mxu0 0.0
    %1782 = vmatprep.subr.mxu0 0.0
    %1783 = vmatpush1.msra.mxu0 0.0
    %1784 = vmatprep.subr.mxu0 0.0
    %1785 = vmatpush1.msra.mxu0 0.0
    %1786 = vmatprep.subr.mxu0 0.0
    %1787 = vmatpush1.msra.mxu0 0.0
    %1788 = vmatprep.subr.mxu0 0.0
    %1789 = vmatpush1.msra.mxu0 0.0
    %1790 = vmatprep.subr.mxu0 0.0
    %1791 = vmatpush1.msra.mxu0 0.0
    %1792 = vmatprep.subr.mxu0 0.0
    %1793 = vmatpush1.msra.mxu0 0.0
    %1794 = vmatprep.subr.mxu0 0.0
    %1795 = vmatpush1.msra.mxu0 0.0
    %1796 = vmatprep.subr.mxu0 0.0
    %1797 = vmatpush1.msra.mxu0 0.0
    %1798 = vmatprep.subr.mxu0 0.0
    %1799 = vmatpush1.msra.mxu0 0.0
    %1800 = vmatprep.subr.mxu0 0.0
    %1801 = vmatpush1.msra.mxu0 0.0
    %1802 = vmatprep.subr.mxu0 0.0
    %1803 = vmatpush1.msra.mxu0 0.0
    %1804 = vmatprep.subr.mxu0 0.0
    %1805 = vmatpush1.msra.mxu0 0.0
    %1806 = vmatprep.mubr.f32.mxu0 0.0
    %1807 = vmatmul.mubr.f32.gmra.mrb[0].mxu0 %v1740
    %v1808 = vpop.f32.mrb[0].mxu0
    %v1809 = vadd.f32 0.0, %v1808
    %v1810 = vpop.f32.mrb[0].mxu0
    %1811 = vdwg.mxu0
    %v1812 = vld [vmem:[%s800] sm:$0xff]
    %v1813 = vld [vmem:[%s800 + $0x8] sm:$0xff]
    %v1814 = vld [vmem:[%s800 + $0x10] sm:$0x3]
    %v1816 = vsel %vm131, %v1809, 0
    %v1819 = vsel %vm480, %v1814, 0
    %1821 = vmatprep.subr.mxu0 0.0
    %1822 = vmatpush1.msra.mxu0 %v1812
    %1823 = vmatprep.subr.mxu0 0.0
    %1824 = vmatpush1.msra.mxu0 %v1813
    %1825 = vmatprep.subr.mxu0 0.0
    %1826 = vmatpush1.msra.mxu0 %v1819
    %1827 = vmatprep.subr.mxu0 0.0
    %1828 = vmatpush1.msra.mxu0 0.0
    %1829 = vmatprep.subr.mxu0 0.0
    %1830 = vmatpush1.msra.mxu0 0.0
    %1831 = vmatprep.subr.mxu0 0.0
    %1832 = vmatpush1.msra.mxu0 0.0
    %1833 = vmatprep.subr.mxu0 0.0
    %1834 = vmatpush1.msra.mxu0 0.0
    %1835 = vmatprep.subr.mxu0 0.0
    %1836 = vmatpush1.msra.mxu0 0.0
    %1837 = vmatprep.subr.mxu0 0.0
    %1838 = vmatpush1.msra.mxu0 0.0
    %1839 = vmatprep.subr.mxu0 0.0
    %1840 = vmatpush1.msra.mxu0 0.0
    %1841 = vmatprep.subr.mxu0 0.0
    %1842 = vmatpush1.msra.mxu0 0.0
    %1843 = vmatprep.subr.mxu0 0.0
    %1844 = vmatpush1.msra.mxu0 0.0
    %1845 = vmatprep.subr.mxu0 0.0
    %1846 = vmatpush1.msra.mxu0 0.0
    %1847 = vmatprep.subr.mxu0 0.0
    %1848 = vmatpush1.msra.mxu0 0.0
    %1849 = vmatprep.subr.mxu0 0.0
    %1850 = vmatpush1.msra.mxu0 0.0
    %1851 = vmatprep.subr.mxu0 0.0
    %1852 = vmatpush1.msra.mxu0 0.0
    %1853 = vmatprep.subr.mxu0 0.0
    %1854 = vmatpush1.msra.mxu0 0.0
    %1855 = vmatprep.subr.mxu0 0.0
    %1856 = vmatpush1.msra.mxu0 0.0
    %1857 = vmatprep.subr.mxu0 0.0
    %1858 = vmatpush1.msra.mxu0 0.0
    %1859 = vmatprep.subr.mxu0 0.0
    %1860 = vmatpush1.msra.mxu0 0.0
    %1861 = vmatprep.subr.mxu0 0.0
    %1862 = vmatpush1.msra.mxu0 0.0
    %1863 = vmatprep.subr.mxu0 0.0
    %1864 = vmatpush1.msra.mxu0 0.0
    %1865 = vmatprep.subr.mxu0 0.0
    %1866 = vmatpush1.msra.mxu0 0.0
    %1867 = vmatprep.subr.mxu0 0.0
    %1868 = vmatpush1.msra.mxu0 0.0
    %1869 = vmatprep.subr.mxu0 0.0
    %1870 = vmatpush1.msra.mxu0 0.0
    %1871 = vmatprep.subr.mxu0 0.0
    %1872 = vmatpush1.msra.mxu0 0.0
    %1873 = vmatprep.subr.mxu0 0.0
    %1874 = vmatpush1.msra.mxu0 0.0
    %1875 = vmatprep.subr.mxu0 0.0
    %1876 = vmatpush1.msra.mxu0 0.0
    %1877 = vmatprep.subr.mxu0 0.0
    %1878 = vmatpush1.msra.mxu0 0.0
    %1879 = vmatprep.subr.mxu0 0.0
    %1880 = vmatpush1.msra.mxu0 0.0
    %1881 = vmatprep.subr.mxu0 0.0
    %1882 = vmatpush1.msra.mxu0 0.0
    %1883 = vmatprep.subr.mxu0 0.0
    %1884 = vmatpush1.msra.mxu0 0.0
    %1885 = vmatprep.mubr.f32.mxu0 0.0
    %1886 = vmatmul.mubr.f32.gmra.mrb[0].mxu0 %v1816
    %v1887 = vpop.f32.mrb[0].mxu0
    %v1888 = vadd.f32 0.0, %v1887
    %v1889 = vpop.f32.mrb[0].mxu0
    %1890 = vdwg.mxu0
    %v1891 = vadd.f32 %v1639, %v1888
    %1892 = vrot.lane.b32.xlu0 %v118, 74
    %v1893 = vpop.permute.xlu0 %1892
    %1894 = vrot.lane.b32.xlu0 %v118, 2
    %v1895 = vpop.permute.xlu0 %1894
    %1896 = vrot.lane.b32.xlu0 %v120, 2
    %v1897 = vpop.permute.xlu0 %1896
    %v1898 = vsel %vm887, %v1895, %v1897
    %v1899 = vsel %vm131, %v1893, 0
    %v1901 = vsel %vm131, %v1898, 0
    %1903 = vmatprep.subr.mxu0 0.0
    %1904 = vmatpush1.xpose.msra.mxu0 %v1901
    %1905 = vmatprep.subr.mxu0 0.0
    %1906 = vmatpush1.xpose.msra.mxu0 0.0
    %1907 = vmatprep.subr.mxu0 0.0
    %1908 = vmatpush1.xpose.msra.mxu0 0.0
    %1909 = vmatprep.subr.mxu0 0.0
    %1910 = vmatpush1.xpose.msra.mxu0 0.0
    %1911 = vmatprep.subr.mxu0 0.0
    %1912 = vmatpush1.xpose.msra.mxu0 0.0
    %1913 = vmatprep.subr.mxu0 0.0
    %1914 = vmatpush1.xpose.msra.mxu0 0.0
    %1915 = vmatprep.subr.mxu0 0.0
    %1916 = vmatpush1.xpose.msra.mxu0 0.0
    %1917 = vmatprep.subr.mxu0 0.0
    %1918 = vmatpush1.xpose.msra.mxu0 0.0
    %1919 = vmatprep.subr.mxu0 0.0
    %1920 = vmatpush1.xpose.msra.mxu0 0.0
    %1921 = vmatprep.subr.mxu0 0.0
    %1922 = vmatpush1.xpose.msra.mxu0 0.0
    %1923 = vmatprep.subr.mxu0 0.0
    %1924 = vmatpush1.xpose.msra.mxu0 0.0
    %1925 = vmatprep.subr.mxu0 0.0
    %1926 = vmatpush1.xpose.msra.mxu0 0.0
    %1927 = vmatprep.subr.mxu0 0.0
    %1928 = vmatpush1.xpose.msra.mxu0 0.0
    %1929 = vmatprep.subr.mxu0 0.0
    %1930 = vmatpush1.xpose.msra.mxu0 0.0
    %1931 = vmatprep.subr.mxu0 0.0
    %1932 = vmatpush1.xpose.msra.mxu0 0.0
    %1933 = vmatprep.subr.mxu0 0.0
    %1934 = vmatpush1.xpose.msra.mxu0 0.0
    %1935 = vmatprep.subr.mxu0 0.0
    %1936 = vmatpush1.xpose.msra.mxu0 0.0
    %1937 = vmatprep.subr.mxu0 0.0
    %1938 = vmatpush1.xpose.msra.mxu0 0.0
    %1939 = vmatprep.subr.mxu0 0.0
    %1940 = vmatpush1.xpose.msra.mxu0 0.0
    %1941 = vmatprep.subr.mxu0 0.0
    %1942 = vmatpush1.xpose.msra.mxu0 0.0
    %1943 = vmatprep.subr.mxu0 0.0
    %1944 = vmatpush1.xpose.msra.mxu0 0.0
    %1945 = vmatprep.subr.mxu0 0.0
    %1946 = vmatpush1.xpose.msra.mxu0 0.0
    %1947 = vmatprep.subr.mxu0 0.0
    %1948 = vmatpush1.xpose.msra.mxu0 0.0
    %1949 = vmatprep.subr.mxu0 0.0
    %1950 = vmatpush1.xpose.msra.mxu0 0.0
    %1951 = vmatprep.subr.mxu0 0.0
    %1952 = vmatpush1.xpose.msra.mxu0 0.0
    %1953 = vmatprep.subr.mxu0 0.0
    %1954 = vmatpush1.xpose.msra.mxu0 0.0
    %1955 = vmatprep.subr.mxu0 0.0
    %1956 = vmatpush1.xpose.msra.mxu0 0.0
    %1957 = vmatprep.subr.mxu0 0.0
    %1958 = vmatpush1.xpose.msra.mxu0 0.0
    %1959 = vmatprep.subr.mxu0 0.0
    %1960 = vmatpush1.xpose.msra.mxu0 0.0
    %1961 = vmatprep.subr.mxu0 0.0
    %1962 = vmatpush1.xpose.msra.mxu0 0.0
    %1963 = vmatprep.subr.mxu0 0.0
    %1964 = vmatpush1.xpose.msra.mxu0 0.0
    %1965 = vmatprep.subr.mxu0 0.0
    %1966 = vmatpush1.xpose.msra.mxu0 0.0
    %1967 = vmatprep.mubr.f32.mxu0 0.0
    %1968 = vmatmul.mubr.f32.gmra.mrb[0].mxu0 %v1899
    %v1969 = vpop.f32.mrb[0].mxu0
    %v1970 = vadd.f32 0.0, %v1969
    %v1971 = vpop.f32.mrb[0].mxu0
    %1972 = vdwg.mxu0
    %v1973 = vmul.f32 %v1970, 0.11785114
    %v1974 = vsel %vm126, %v1973, -1e+30
    %v1975 = vsel %vm208, %v1974, -inf
    %1976 = vmax.xlane.f32.xlu0 %v1975
    %v1977 = vpop.xlane.xlu0 %1976
    %v1978 = vsub.f32 %v1974, %v1977
    %v1979 = vmul.f32 %v1978, 1.442695
    %v1980 = vpow.pop %v1979
    %v1981 = vsel %vm208, %v1980, 0.0
    %1982 = vadd.xlane.f32.xlu0 %v1981
    %v1983 = vpop.xlane.xlu0 %1982
    %v1984 = vrcp.pop %v1983
    %v1985 = vmul.f32 %v1983, %v1984
    %v1986 = vsub.f32 2.0, %v1985
    %v1987 = vmul.f32 %v1984, %v1986
    %v1988 = vmul.f32 %v1980, %v1987
    %1989 = vrot.lane.b32.xlu0 %v120, 58
    %v1990 = vpop.permute.xlu0 %1989
    %v1993 = vsel %vm208, %v1988, 0
    %1995 = vmatprep.subr.mxu0 0.0
    %1996 = vmatpush1.msra.mxu0 %v1990
    %1997 = vmatprep.subr.mxu0 0.0
    %1998 = vmatpush1.msra.mxu0 0.0
    %1999 = vmatprep.subr.mxu0 0.0
    %2000 = vmatpush1.msra.mxu0 0.0
    %2001 = vmatprep.subr.mxu0 0.0
    %2002 = vmatpush1.msra.mxu0 0.0
    %2003 = vmatprep.subr.mxu0 0.0
    %2004 = vmatpush1.msra.mxu0 0.0
    %2005 = vmatprep.subr.mxu0 0.0
    %2006 = vmatpush1.msra.mxu0 0.0
    %2007 = vmatprep.subr.mxu0 0.0
    %2008 = vmatpush1.msra.mxu0 0.0
    %2009 = vmatprep.subr.mxu0 0.0
    %2010 = vmatpush1.msra.mxu0 0.0
    %2011 = vmatprep.subr.mxu0 0.0
    %2012 = vmatpush1.msra.mxu0 0.0
    %2013 = vmatprep.subr.mxu0 0.0
    %2014 = vmatpush1.msra.mxu0 0.0
    %2015 = vmatprep.subr.mxu0 0.0
    %2016 = vmatpush1.msra.mxu0 0.0
    %2017 = vmatprep.subr.mxu0 0.0
    %2018 = vmatpush1.msra.mxu0 0.0
    %2019 = vmatprep.subr.mxu0 0.0
    %2020 = vmatpush1.msra.mxu0 0.0
    %2021 = vmatprep.subr.mxu0 0.0
    %2022 = vmatpush1.msra.mxu0 0.0
    %2023 = vmatprep.subr.mxu0 0.0
    %2024 = vmatpush1.msra.mxu0 0.0
    %2025 = vmatprep.subr.mxu0 0.0
    %2026 = vmatpush1.msra.mxu0 0.0
    %2027 = vmatprep.subr.mxu0 0.0
    %2028 = vmatpush1.msra.mxu0 0.0
    %2029 = vmatprep.subr.mxu0 0.0
    %2030 = vmatpush1.msra.mxu0 0.0
    %2031 = vmatprep.subr.mxu0 0.0
    %2032 = vmatpush1.msra.mxu0 0.0
    %2033 = vmatprep.subr.mxu0 0.0
    %2034 = vmatpush1.msra.mxu0 0.0
    %2035 = vmatprep.subr.mxu0 0.0
    %2036 = vmatpush1.msra.mxu0 0.0
    %2037 = vmatprep.subr.mxu0 0.0
    %2038 = vmatpush1.msra.mxu0 0.0
    %2039 = vmatprep.subr.mxu0 0.0
    %2040 = vmatpush1.msra.mxu0 0.0
    %2041 = vmatprep.subr.mxu0 0.0
    %2042 = vmatpush1.msra.mxu0 0.0
    %2043 = vmatprep.subr.mxu0 0.0
    %2044 = vmatpush1.msra.mxu0 0.0
    %2045 = vmatprep.subr.mxu0 0.0
    %2046 = vmatpush1.msra.mxu0 0.0
    %2047 = vmatprep.subr.mxu0 0.0
    %2048 = vmatpush1.msra.mxu0 0.0
    %2049 = vmatprep.subr.mxu0 0.0
    %2050 = vmatpush1.msra.mxu0 0.0
    %2051 = vmatprep.subr.mxu0 0.0
    %2052 = vmatpush1.msra.mxu0 0.0
    %2053 = vmatprep.subr.mxu0 0.0
    %2054 = vmatpush1.msra.mxu0 0.0
    %2055 = vmatprep.subr.mxu0 0.0
    %2056 = vmatpush1.msra.mxu0 0.0
    %2057 = vmatprep.subr.mxu0 0.0
    %2058 = vmatpush1.msra.mxu0 0.0
    %2059 = vmatprep.mubr.f32.mxu0 0.0
    %2060 = vmatmul.mubr.f32.gmra.mrb[0].mxu0 %v1993
    %v2061 = vpop.f32.mrb[0].mxu0
    %v2062 = vadd.f32 0.0, %v2061
    %v2063 = vpop.f32.mrb[0].mxu0
    %2064 = vdwg.mxu0
    %v2065 = vld [vmem:[%s1055] sm:$0xff]
    %v2066 = vld [vmem:[%s1055 + $0x8] sm:$0xff]
    %v2067 = vld [vmem:[%s1055 + $0x10] sm:$0x3]
    %v2069 = vsel %vm131, %v2062, 0
    %v2072 = vsel %vm480, %v2067, 0
    %2074 = vmatprep.subr.mxu0 0.0
    %2075 = vmatpush1.msra.mxu0 %v2065
    %2076 = vmatprep.subr.mxu0 0.0
    %2077 = vmatpush1.msra.mxu0 %v2066
    %2078 = vmatprep.subr.mxu0 0.0
    %2079 = vmatpush1.msra.mxu0 %v2072
    %2080 = vmatprep.subr.mxu0 0.0
    %2081 = vmatpush1.msra.mxu0 0.0
    %2082 = vmatprep.subr.mxu0 0.0
    %2083 = vmatpush1.msra.mxu0 0.0
    %2084 = vmatprep.subr.mxu0 0.0
    %2085 = vmatpush1.msra.mxu0 0.0
    %2086 = vmatprep.subr.mxu0 0.0
    %2087 = vmatpush1.msra.mxu0 0.0
    %2088 = vmatprep.subr.mxu0 0.0
    %2089 = vmatpush1.msra.mxu0 0.0
    %2090 = vmatprep.subr.mxu0 0.0
    %2091 = vmatpush1.msra.mxu0 0.0
    %2092 = vmatprep.subr.mxu0 0.0
    %2093 = vmatpush1.msra.mxu0 0.0
    %2094 = vmatprep.subr.mxu0 0.0
    %2095 = vmatpush1.msra.mxu0 0.0
    %2096 = vmatprep.subr.mxu0 0.0
    %2097 = vmatpush1.msra.mxu0 0.0
    %2098 = vmatprep.subr.mxu0 0.0
    %2099 = vmatpush1.msra.mxu0 0.0
    %2100 = vmatprep.subr.mxu0 0.0
    %2101 = vmatpush1.msra.mxu0 0.0
    %2102 = vmatprep.subr.mxu0 0.0
    %2103 = vmatpush1.msra.mxu0 0.0
    %2104 = vmatprep.subr.mxu0 0.0
    %2105 = vmatpush1.msra.mxu0 0.0
    %2106 = vmatprep.subr.mxu0 0.0
    %2107 = vmatpush1.msra.mxu0 0.0
    %2108 = vmatprep.subr.mxu0 0.0
    %2109 = vmatpush1.msra.mxu0 0.0
    %2110 = vmatprep.subr.mxu0 0.0
    %2111 = vmatpush1.msra.mxu0 0.0
    %2112 = vmatprep.subr.mxu0 0.0
    %2113 = vmatpush1.msra.mxu0 0.0
    %2114 = vmatprep.subr.mxu0 0.0
    %2115 = vmatpush1.msra.mxu0 0.0
    %2116 = vmatprep.subr.mxu0 0.0
    %2117 = vmatpush1.msra.mxu0 0.0
    %2118 = vmatprep.subr.mxu0 0.0
    %2119 = vmatpush1.msra.mxu0 0.0
    %2120 = vmatprep.subr.mxu0 0.0
    %2121 = vmatpush1.msra.mxu0 0.0
    %2122 = vmatprep.subr.mxu0 0.0
    %2123 = vmatpush1.msra.mxu0 0.0
    %2124 = vmatprep.subr.mxu0 0.0
    %2125 = vmatpush1.msra.mxu0 0.0
    %2126 = vmatprep.subr.mxu0 0.0
    %2127 = vmatpush1.msra.mxu0 0.0
    %2128 = vmatprep.subr.mxu0 0.0
    %2129 = vmatpush1.msra.mxu0 0.0
    %2130 = vmatprep.subr.mxu0 0.0
    %2131 = vmatpush1.msra.mxu0 0.0
    %2132 = vmatprep.subr.mxu0 0.0
    %2133 = vmatpush1.msra.mxu0 0.0
    %2134 = vmatprep.subr.mxu0 0.0
    %2135 = vmatpush1.msra.mxu0 0.0
    %2136 = vmatprep.subr.mxu0 0.0
    %2137 = vmatpush1.msra.mxu0 0.0
    %2138 = vmatprep.mubr.f32.mxu0 0.0
    %2139 = vmatmul.mubr.f32.gmra.mrb[0].mxu0 %v2069
    %v2140 = vpop.f32.mrb[0].mxu0
    %v2141 = vadd.f32 0.0, %v2140
    %v2142 = vpop.f32.mrb[0].mxu0
    %2143 = vdwg.mxu0
    %v2144 = vadd.f32 %v1891, %v2141
    %v2145 = vadd.f32 %v2144, %v1140
    %2146 = vst.msk [vmem:[#allocation2 + $0x8] sm:$0xff] %vm38, %v2145
    // Predicated region
    $region18: #{multi_head_attention.1} parent=1 // pred_check
      _
    $region19: #{multi_head_attention.1} parent=1 // pred_check_branch
      %2148 = sbr.rel (0) target = $region21
    $region20: #{multi_head_attention.1} parent=1 // pred_region
      %s2150 = ssub.s32 256, 256
      %2151 = vsyncadd [#allocation3], %s2150
      %s2152 = sshll.u32 [#allocation2], 4
      %s2153 = int_to_ptr.vmem [resolvable:$true] %s2152
      %2158 = dma.vmem_to_hbm [thread:$0]  %s2153, 256, %s4, [#allocation3], 128, 128, 8
    $region21: #{multi_head_attention.1} parent=1 // pred_fallthru
      _
    // Predicated region
    $region22: #{multi_head_attention.1} parent=1 // pred_check
      _
    $region23: #{multi_head_attention.1} parent=1 // pred_check_branch
      %2160 = sbr.rel (0) target = $region25
    $region24: #{multi_head_attention.1} parent=1 // pred_region
      %2161 = dma.done [#allocation3], 256
    $region25: #{multi_head_attention.1} parent=1 // pred_fallthru
      _
    %2162 = vsyncpa [#allocation3], 1

</llo_original>
